<compile_context>
chip_gen: v5e
topology: v5e:2x2
jax: 0.10.0
libtpu: 0.0.40
codegen_flags: <defaults>
</compile_context>

<pallas_src>
import functools

import jax
import jax.numpy as jnp
import numpy as np
from jax import lax
from jax.experimental import pallas as pl
from jax.experimental.pallas import tpu as pltpu

# ----------------------------- hyperparameters ------------------------------
N_MELS = 16
REF_ENC_FILTERS = (4, 8, 16)        # K = 3 reference-encoder conv layers
E = 32                              # style embedding size (num_units)
NUM_HEADS = 4
TOKEN_NUM = 10
GRU_HIDDEN = E // 2                 # 16
KEY_DIM = E // NUM_HEADS            # 8 (token embedding dim == per-head dim)
BN_EPS = 1e-5


# ------------------------ host-side operator builders ------------------------
def _conv_row_operators(n, h, w, c, w_t, reorder_rows):
    """3x3 / stride-2 / pad-1 conv as Y = sum_di S_di @ X @ A_di on row-flattened maps.

    X rows are ordered (n, hi), lanes ordered (wi, ci).  Output rows (n, ho) (or
    (ho, n) if reorder_rows), lanes (wo, co).
    """
    cout = int(w_t.shape[0])
    ho = (h - 1) // 2 + 1
    wo = (w - 1) // 2 + 1
    # S_di: 0/1 row selection; output row (n, ho) reads input row 2*ho + di - 1.
    s = np.zeros((3, n * ho, n * h), np.float32)
    for di in range(3):
        for b in range(n):
            for o in range(ho):
                hi = 2 * o + di - 1
                if 0 <= hi < h:
                    s[di, b * ho + o, b * h + hi] = 1.0
    if reorder_rows:
        # last layer: emit rows in (t, n) order so the GRU consumes gi per timestep.
        r = np.zeros((n * ho, n * ho), np.float32)
        for t in range(ho):
            for b in range(n):
                r[t * n + b, b * ho + t] = 1.0
        s = np.einsum('ij,djk->dik', r, s)
    # A_di: conv weights scattered along the (wi, ci) -> (wo, co) lane mapping.
    j_ind = np.zeros((w, wo, 3), np.float32)
    for o in range(wo):
        for dj in range(3):
            wi = 2 * o + dj - 1
            if 0 <= wi < w:
                j_ind[wi, o, dj] = 1.0
    a = jnp.einsum('xoj,kcdj->dxcok', jnp.asarray(j_ind), w_t,
                   precision=lax.Precision.HIGHEST)
    a = a.reshape(3, w * c, wo * cout)
    return jnp.asarray(s), a, ho, wo


def _bn_aux(wo, cout, bias, gamma, beta):
    """BatchNorm helpers for the (wo, co)-interleaved lane layout."""
    p = np.kron(np.ones((wo, 1), np.float32) / float(wo),
                np.eye(cout, dtype=np.float32))                        # [wo*cout, cout]
    pb01 = np.kron(np.ones((1, wo), np.float32),
                   np.eye(cout, dtype=np.float32))                     # [cout, wo*cout]
    pbg = jnp.asarray(pb01) * gamma[:, None]                           # gamma folded in
    bias_full = jnp.tile(bias, wo)[None, :]
    beta_full = jnp.tile(beta, wo)[None, :]
    return jnp.asarray(p), pbg, bias_full, beta_full


def _mha_aux(heads, tk, dh):
    """0/1 helper matrices that batch all attention heads into single matmuls."""
    eye_h = np.eye(heads, dtype=np.float32)
    hm = np.kron(eye_h, np.ones((dh, tk), np.float32))                 # [E, heads*tk]
    rep = np.kron(np.ones((heads, 1), np.float32),
                  np.eye(tk, dtype=np.float32))                        # [heads*tk, tk]
    rept = np.ascontiguousarray(rep.T)                                 # [tk, heads*tk]
    gs = np.kron(eye_h, np.ones((tk, 1), np.float32))                  # [heads*tk, heads]
    gsb = np.kron(eye_h, np.ones((1, tk), np.float32))                 # [heads, heads*tk]
    vm = np.kron(eye_h, np.ones((tk, dh), np.float32))                 # [heads*tk, E]
    return (jnp.asarray(hm), jnp.asarray(rep), jnp.asarray(rept),
            jnp.asarray(gs), jnp.asarray(gsb), jnp.asarray(vm))


# ------------------------------- fused kernel --------------------------------
def _gst_kernel(*refs, num_conv, n_batch, t_steps, hidden, scale):
    x_ref = refs[0]
    conv_refs = refs[1:1 + 6 * num_conv]
    (wih_ref, whh_ref, bih_ref, bhh_ref,
     wq_ref, wkt_ref, embt_ref, emb_ref, wv_ref,
     hm_ref, rept_ref, rep_ref, gs_ref, gsb_ref, vm_ref,
     o_ref, gi_scr) = refs[1 + 6 * num_conv:]

    f32 = jnp.float32

    # ---- fused reference-encoder conv stack: conv + BN(train stats) + ReLU ----
    y = x_ref[...]                                                     # [N*Ty, n_mels]
    for li in range(num_conv):
        s_ref, a_ref, bias_ref, p_ref, pbg_ref, betaf_ref = conv_refs[6 * li:6 * li + 6]
        acc = bias_ref[...]
        for di in range(3):                                            # in-kernel im2col == 3 matmul pairs
            xa = jnp.dot(y, a_ref[di], preferred_element_type=f32)
            acc = acc + jnp.dot(s_ref[di], xa, preferred_element_type=f32)
        # BatchNorm2d (training-mode batch stats over N, H, W per channel).
        m1r = jnp.mean(acc, axis=0, keepdims=True)
        m2r = jnp.mean(acc * acc, axis=0, keepdims=True)
        m1c = jnp.dot(m1r, p_ref[...], preferred_element_type=f32)     # [1, Cout]
        m2c = jnp.dot(m2r, p_ref[...], preferred_element_type=f32)
        var = jnp.maximum(m2c - m1c * m1c, 0.0)
        inv = lax.rsqrt(var + BN_EPS)
        scale_f = jnp.dot(inv, pbg_ref[...], preferred_element_type=f32)
        shift_f = betaf_ref[...] - jnp.dot(m1c * inv, pbg_ref[...],
                                           preferred_element_type=f32)
        y = jnp.maximum(acc * scale_f + shift_f, 0.0)

    # ---- GRU input projection hoisted out of the recurrence (one matmul) -----
    gi = jnp.dot(y, wih_ref[...], preferred_element_type=f32) + bih_ref[...]   # [T*N, 3H]
    for t in range(t_steps):
        gi_scr[t] = gi[t * n_batch:(t + 1) * n_batch, :]

    # ---- GRU recurrence: single in-kernel fori_loop over VMEM-resident gi ----
    whh = whh_ref[...]
    bhh = bhh_ref[...]

    def gru_step(t, h):
        g = gi_scr[t]                                                  # [N, 3H]
        gh = jnp.dot(h, whh, preferred_element_type=f32) + bhh
        r = jax.nn.sigmoid(g[:, :hidden] + gh[:, :hidden])
        z = jax.nn.sigmoid(g[:, hidden:2 * hidden] + gh[:, hidden:2 * hidden])
        nn_ = jnp.tanh(g[:, 2 * hidden:] + r * gh[:, 2 * hidden:])
        return (1.0 - z) * nn_ + z * h

    h = lax.fori_loop(0, t_steps, gru_step,
                      jnp.zeros((n_batch, hidden), f32), unroll=True)

    # ---- style-token multi-head attention, fused on the GRU tail -------------
    q = jnp.dot(h, wq_ref[...], preferred_element_type=f32)            # [N, E]
    kT = jnp.dot(wkt_ref[...], jnp.tanh(embt_ref[...]),
                 preferred_element_type=f32)                           # [E, Tk]
    k_heads = jnp.dot(kT, rept_ref[...],
                      preferred_element_type=f32) * hm_ref[...]        # [E, heads*Tk]
    scores = jnp.dot(q, k_heads, preferred_element_type=f32) * scale   # [N, heads*Tk]
    m = jnp.max(scores, axis=-1, keepdims=True)
    p = jnp.exp(scores - m)
    denom = jnp.dot(jnp.dot(p, gs_ref[...], preferred_element_type=f32),
                    gsb_ref[...], preferred_element_type=f32)          # per-head sums
    attn = p / denom
    v = jnp.dot(jnp.tanh(emb_ref[...]), wv_ref[...],
                preferred_element_type=f32)                            # [Tk, E]
    v_heads = jnp.dot(rep_ref[...], v,
                      preferred_element_type=f32) * vm_ref[...]        # [heads*Tk, E]
    o_ref[...] = jnp.dot(attn, v_heads, preferred_element_type=f32)    # [N, E]


# ------------------------------- full forward --------------------------------
def gst_forward(inputs, params):
    n, ty, n_mels = inputs.shape
    # rows (n, h), lanes (w, c=1) — identical data to the torch NCHW .view(N,1,Ty,n_mels)
    x = inputs.reshape(n * ty, n_mels)

    num_conv = len(params["convs"])
    conv_args = []
    h_cur, w_cur, c_cur = ty, n_mels, 1
    flops = 0
    for li, (w_t, b, gamma, beta) in enumerate(params["convs"]):
        cout = int(w_t.shape[0])
        s_op, a_op, ho, wo = _conv_row_operators(
            n, h_cur, w_cur, c_cur, w_t, reorder_rows=(li == num_conv - 1))
        p_op, pbg_op, bias_full, beta_full = _bn_aux(wo, cout, b, gamma, beta)
        conv_args += [s_op, a_op, bias_full, p_op, pbg_op, beta_full]
        flops += 3 * 2 * (n * h_cur) * (w_cur * c_cur) * (wo * cout)
        flops += 3 * 2 * (n * ho) * (n * h_cur) * (wo * cout)
        h_cur, w_cur, c_cur = ho, wo, cout

    t_steps = h_cur
    feat = w_cur * c_cur
    wih, whh, bih, bhh = params["gru"]
    hidden = int(whh.shape[0])
    # Fold the torch (C, W) GRU-input feature order into Wih so the conv output's
    # (W, C) lane order can be consumed directly.
    perm = np.asarray([c * w_cur + w for w in range(w_cur) for c in range(c_cur)],
                      np.int32)
    wih_perm = wih[perm, :]

    embed, wq, wk, wv = params["stl"]
    tk, dk = int(embed.shape[0]), int(embed.shape[1])
    e = int(wq.shape[1])
    heads = NUM_HEADS
    dh = e // heads
    hm, rep, rept, gs, gsb, vm = _mha_aux(heads, tk, dh)
    attn_args = [wq, jnp.transpose(wk), jnp.transpose(embed), embed, wv,
                 hm, rept, rep, gs, gsb, vm]

    args = [x] + conv_args + [wih_perm, whh, bih, bhh] + attn_args

    flops += 2 * (n * t_steps) * feat * 3 * hidden + t_steps * 2 * n * hidden * 3 * hidden
    flops += 2 * n * hidden * e + 4 * tk * dk * e + 4 * n * e * heads * tk
    transcendentals = t_steps * n * 3 * hidden + 2 * tk * dk + n * heads * tk
    bytes_accessed = sum(int(np.prod(a.shape)) * 4 for a in args) + n * e * 4

    kern = functools.partial(
        _gst_kernel, num_conv=num_conv, n_batch=n, t_steps=t_steps,
        hidden=hidden, scale=1.0 / float(KEY_DIM) ** 0.5)

    out = pl.pallas_call(
        kern,
        out_shape=jax.ShapeDtypeStruct((n, e), jnp.float32),
        in_specs=[pl.BlockSpec(memory_space=pltpu.MemorySpace.VMEM)] * len(args),
        out_specs=pl.BlockSpec(memory_space=pltpu.MemorySpace.VMEM),
        scratch_shapes=[pltpu.VMEM((t_steps, n, 3 * hidden), jnp.float32)],
        compiler_params=pltpu.CompilerParams(vmem_limit_bytes=32 * 1024 * 1024),
        cost_estimate=pl.CostEstimate(flops=int(flops),
                                      transcendentals=int(transcendentals),
                                      bytes_accessed=int(bytes_accessed)),
    )(*args)
    # TODO(synk): BatchNorm running-stat buffers (stateful torch buffers) are not
    # updated; normalization uses training-mode batch statistics computed in-kernel.
    return out[:, None, :]                                             # [N, 1, E] (T_q = 1)


# ------------------------- deterministic parameters --------------------------
def init_params(key):
    ks = iter(jax.random.split(key, 32))
    convs = []
    cin = 1
    for cout in REF_ENC_FILTERS:
        w = 0.1 * jax.random.normal(next(ks), (cout, cin, 3, 3), jnp.float32)
        b = 0.05 * jax.random.normal(next(ks), (cout,), jnp.float32)
        gamma = jnp.ones((cout,), jnp.float32)
        beta = jnp.zeros((cout,), jnp.float32)
        convs.append((w, b, gamma, beta))
        cin = cout
    feat = REF_ENC_FILTERS[-1] * (N_MELS // (2 ** len(REF_ENC_FILTERS)))
    wih = 0.1 * jax.random.normal(next(ks), (feat, 3 * GRU_HIDDEN), jnp.float32)
    whh = 0.1 * jax.random.normal(next(ks), (GRU_HIDDEN, 3 * GRU_HIDDEN), jnp.float32)
    bih = 0.05 * jax.random.normal(next(ks), (1, 3 * GRU_HIDDEN), jnp.float32)
    bhh = 0.05 * jax.random.normal(next(ks), (1, 3 * GRU_HIDDEN), jnp.float32)
    embed = 0.5 * jax.random.normal(next(ks), (TOKEN_NUM, KEY_DIM), jnp.float32)
    wq = 0.1 * jax.random.normal(next(ks), (GRU_HIDDEN, E), jnp.float32)
    wk = 0.1 * jax.random.normal(next(ks), (KEY_DIM, E), jnp.float32)
    wv = 0.1 * jax.random.normal(next(ks), (KEY_DIM, E), jnp.float32)
    return {"convs": convs, "gru": (wih, whh, bih, bhh), "stl": (embed, wq, wk, wv)}


if __name__ == "__main__":
    key = jax.random.PRNGKey(0)
    k_in, k_p = jax.random.split(key)
    # inputs: [N, Ty, n_mels] mel spectrogram
    inputs = jax.random.normal(k_in, (2, 16, N_MELS), jnp.float32)
    params = init_params(k_p)
    style_embed = jax.block_until_ready(jax.jit(gst_forward)(inputs, params))
    assert style_embed.shape == (2, 1, E), style_embed.shape
    assert bool(jnp.all(jnp.isfinite(style_embed)))
    print("KERNEL_OK")
</pallas_src>

<mosaic_0001>
module attributes {stable_mosaic.version = 11 : i64} {
  func.func @_gst_kernel(%arg0: memref<32x16xf32, #tpu.memory_space<vmem>>, %arg1: memref<3x16x32xf32, #tpu.memory_space<vmem>>, %arg2: memref<3x16x32xf32, #tpu.memory_space<vmem>>, %arg3: memref<1x32xf32, #tpu.memory_space<vmem>>, %arg4: memref<32x4xf32, #tpu.memory_space<vmem>>, %arg5: memref<4x32xf32, #tpu.memory_space<vmem>>, %arg6: memref<1x32xf32, #tpu.memory_space<vmem>>, %arg7: memref<3x8x16xf32, #tpu.memory_space<vmem>>, %arg8: memref<3x32x32xf32, #tpu.memory_space<vmem>>, %arg9: memref<1x32xf32, #tpu.memory_space<vmem>>, %arg10: memref<32x8xf32, #tpu.memory_space<vmem>>, %arg11: memref<8x32xf32, #tpu.memory_space<vmem>>, %arg12: memref<1x32xf32, #tpu.memory_space<vmem>>, %arg13: memref<3x4x8xf32, #tpu.memory_space<vmem>>, %arg14: memref<3x32x32xf32, #tpu.memory_space<vmem>>, %arg15: memref<1x32xf32, #tpu.memory_space<vmem>>, %arg16: memref<32x16xf32, #tpu.memory_space<vmem>>, %arg17: memref<16x32xf32, #tpu.memory_space<vmem>>, %arg18: memref<1x32xf32, #tpu.memory_space<vmem>>, %arg19: memref<32x48xf32, #tpu.memory_space<vmem>>, %arg20: memref<16x48xf32, #tpu.memory_space<vmem>>, %arg21: memref<1x48xf32, #tpu.memory_space<vmem>>, %arg22: memref<1x48xf32, #tpu.memory_space<vmem>>, %arg23: memref<16x32xf32, #tpu.memory_space<vmem>>, %arg24: memref<32x8xf32, #tpu.memory_space<vmem>>, %arg25: memref<8x10xf32, #tpu.memory_space<vmem>>, %arg26: memref<10x8xf32, #tpu.memory_space<vmem>>, %arg27: memref<8x32xf32, #tpu.memory_space<vmem>>, %arg28: memref<32x40xf32, #tpu.memory_space<vmem>>, %arg29: memref<10x40xf32, #tpu.memory_space<vmem>>, %arg30: memref<40x10xf32, #tpu.memory_space<vmem>>, %arg31: memref<40x4xf32, #tpu.memory_space<vmem>>, %arg32: memref<4x40xf32, #tpu.memory_space<vmem>>, %arg33: memref<40x32xf32, #tpu.memory_space<vmem>>, %arg34: memref<2x32xf32, #tpu.memory_space<vmem>>, %arg35: memref<2x2x48xf32, #tpu.memory_space<vmem>>) attributes {dimension_semantics = [], scalar_prefetch = 0 : i64, scratch_operands = 1 : i64, tpu.core_type = #tpu.core_type<tc>} {
    %c0 = arith.constant 0 : index
    %c0_0 = arith.constant 0 : index
    %0 = vector.load %arg0[%c0, %c0_0] : memref<32x16xf32, #tpu.memory_space<vmem>>, vector<32x16xf32>
    %c0_1 = arith.constant 0 : index
    %c0_2 = arith.constant 0 : index
    %1 = vector.load %arg3[%c0_1, %c0_2] : memref<1x32xf32, #tpu.memory_space<vmem>>, vector<1x32xf32>
    %c0_3 = arith.constant 0 : index
    %c0_4 = arith.constant 0 : index
    %c0_5 = arith.constant 0 : index
    %2 = vector.load %arg2[%c0_3, %c0_4, %c0_5] : memref<3x16x32xf32, #tpu.memory_space<vmem>>, vector<1x16x32xf32>
    %3 = vector.shape_cast %2 : vector<1x16x32xf32> to vector<16x32xf32>
    %cst = arith.constant dense<0.000000e+00> : vector<32x32xf32>
    %4 = tpu.matmul %0, %3, %cst {dimension_numbers = #tpu.dot_dimension_numbers<[1], [0], [0], [1], [0, 0, 1, 1], [], []>} : vector<32x16xf32>, vector<16x32xf32>, vector<32x32xf32> -> vector<32x32xf32>
    %c0_6 = arith.constant 0 : index
    %c0_7 = arith.constant 0 : index
    %c0_8 = arith.constant 0 : index
    %5 = vector.load %arg1[%c0_6, %c0_7, %c0_8] : memref<3x16x32xf32, #tpu.memory_space<vmem>>, vector<1x16x32xf32>
    %6 = vector.shape_cast %5 : vector<1x16x32xf32> to vector<16x32xf32>
    %cst_9 = arith.constant dense<0.000000e+00> : vector<16x32xf32>
    %7 = tpu.matmul %6, %4, %cst_9 {dimension_numbers = #tpu.dot_dimension_numbers<[1], [0], [0], [1], [0, 0, 1, 1], [], []>} : vector<16x32xf32>, vector<32x32xf32>, vector<16x32xf32> -> vector<16x32xf32>
    %8 = vector.broadcast %1 : vector<1x32xf32> to vector<16x32xf32>
    %9 = arith.addf %8, %7 : vector<16x32xf32>
    %c1 = arith.constant 1 : index
    %c0_10 = arith.constant 0 : index
    %c0_11 = arith.constant 0 : index
    %10 = vector.load %arg2[%c1, %c0_10, %c0_11] : memref<3x16x32xf32, #tpu.memory_space<vmem>>, vector<1x16x32xf32>
    %11 = vector.shape_cast %10 : vector<1x16x32xf32> to vector<16x32xf32>
    %cst_12 = arith.constant dense<0.000000e+00> : vector<32x32xf32>
    %12 = tpu.matmul %0, %11, %cst_12 {dimension_numbers = #tpu.dot_dimension_numbers<[1], [0], [0], [1], [0, 0, 1, 1], [], []>} : vector<32x16xf32>, vector<16x32xf32>, vector<32x32xf32> -> vector<32x32xf32>
    %c1_13 = arith.constant 1 : index
    %c0_14 = arith.constant 0 : index
    %c0_15 = arith.constant 0 : index
    %13 = vector.load %arg1[%c1_13, %c0_14, %c0_15] : memref<3x16x32xf32, #tpu.memory_space<vmem>>, vector<1x16x32xf32>
    %14 = vector.shape_cast %13 : vector<1x16x32xf32> to vector<16x32xf32>
    %cst_16 = arith.constant dense<0.000000e+00> : vector<16x32xf32>
    %15 = tpu.matmul %14, %12, %cst_16 {dimension_numbers = #tpu.dot_dimension_numbers<[1], [0], [0], [1], [0, 0, 1, 1], [], []>} : vector<16x32xf32>, vector<32x32xf32>, vector<16x32xf32> -> vector<16x32xf32>
    %16 = arith.addf %9, %15 : vector<16x32xf32>
    %c2 = arith.constant 2 : index
    %c0_17 = arith.constant 0 : index
    %c0_18 = arith.constant 0 : index
    %17 = vector.load %arg2[%c2, %c0_17, %c0_18] : memref<3x16x32xf32, #tpu.memory_space<vmem>>, vector<1x16x32xf32>
    %18 = vector.shape_cast %17 : vector<1x16x32xf32> to vector<16x32xf32>
    %cst_19 = arith.constant dense<0.000000e+00> : vector<32x32xf32>
    %19 = tpu.matmul %0, %18, %cst_19 {dimension_numbers = #tpu.dot_dimension_numbers<[1], [0], [0], [1], [0, 0, 1, 1], [], []>} : vector<32x16xf32>, vector<16x32xf32>, vector<32x32xf32> -> vector<32x32xf32>
    %c2_20 = arith.constant 2 : index
    %c0_21 = arith.constant 0 : index
    %c0_22 = arith.constant 0 : index
    %20 = vector.load %arg1[%c2_20, %c0_21, %c0_22] : memref<3x16x32xf32, #tpu.memory_space<vmem>>, vector<1x16x32xf32>
    %21 = vector.shape_cast %20 : vector<1x16x32xf32> to vector<16x32xf32>
    %cst_23 = arith.constant dense<0.000000e+00> : vector<16x32xf32>
    %22 = tpu.matmul %21, %19, %cst_23 {dimension_numbers = #tpu.dot_dimension_numbers<[1], [0], [0], [1], [0, 0, 1, 1], [], []>} : vector<16x32xf32>, vector<32x32xf32>, vector<16x32xf32> -> vector<16x32xf32>
    %23 = arith.addf %16, %22 : vector<16x32xf32>
    %cst_24 = arith.constant dense<0.000000e+00> : vector<32xf32>
    %24 = vector.multi_reduction <add>, %23, %cst_24 [0] : vector<16x32xf32> to vector<32xf32>
    %25 = vector.shape_cast %24 : vector<32xf32> to vector<1x32xf32>
    %cst_25 = arith.constant 1.600000e+01 : f32
    %26 = vector.broadcast %cst_25 : f32 to vector<1x32xf32>
    %27 = arith.divf %25, %26 : vector<1x32xf32>
    %28 = arith.mulf %23, %23 : vector<16x32xf32>
    %cst_26 = arith.constant dense<0.000000e+00> : vector<32xf32>
    %29 = vector.multi_reduction <add>, %28, %cst_26 [0] : vector<16x32xf32> to vector<32xf32>
    %30 = vector.shape_cast %29 : vector<32xf32> to vector<1x32xf32>
    %cst_27 = arith.constant 1.600000e+01 : f32
    %31 = vector.broadcast %cst_27 : f32 to vector<1x32xf32>
    %32 = arith.divf %30, %31 : vector<1x32xf32>
    %c0_28 = arith.constant 0 : index
    %c0_29 = arith.constant 0 : index
    %33 = vector.load %arg4[%c0_28, %c0_29] : memref<32x4xf32, #tpu.memory_space<vmem>>, vector<32x4xf32>
    %cst_30 = arith.constant dense<0.000000e+00> : vector<1x4xf32>
    %34 = tpu.matmul %27, %33, %cst_30 {dimension_numbers = #tpu.dot_dimension_numbers<[1], [0], [0], [1], [0, 0, 1, 1], [], []>} : vector<1x32xf32>, vector<32x4xf32>, vector<1x4xf32> -> vector<1x4xf32>
    %c0_31 = arith.constant 0 : index
    %c0_32 = arith.constant 0 : index
    %35 = vector.load %arg4[%c0_31, %c0_32] : memref<32x4xf32, #tpu.memory_space<vmem>>, vector<32x4xf32>
    %cst_33 = arith.constant dense<0.000000e+00> : vector<1x4xf32>
    %36 = tpu.matmul %32, %35, %cst_33 {dimension_numbers = #tpu.dot_dimension_numbers<[1], [0], [0], [1], [0, 0, 1, 1], [], []>} : vector<1x32xf32>, vector<32x4xf32>, vector<1x4xf32> -> vector<1x4xf32>
    %37 = arith.mulf %34, %34 : vector<1x4xf32>
    %38 = arith.subf %36, %37 : vector<1x4xf32>
    %cst_34 = arith.constant 0.000000e+00 : f32
    %39 = vector.broadcast %cst_34 : f32 to vector<1x4xf32>
    %40 = arith.maximumf %38, %39 : vector<1x4xf32>
    %cst_35 = arith.constant 9.99999974E-6 : f32
    %41 = vector.broadcast %cst_35 : f32 to vector<1x4xf32>
    %42 = arith.addf %40, %41 : vector<1x4xf32>
    %43 = math.rsqrt %42 : vector<1x4xf32>
    %c0_36 = arith.constant 0 : index
    %c0_37 = arith.constant 0 : index
    %44 = vector.load %arg5[%c0_36, %c0_37] : memref<4x32xf32, #tpu.memory_space<vmem>>, vector<4x32xf32>
    %cst_38 = arith.constant dense<0.000000e+00> : vector<1x32xf32>
    %45 = tpu.matmul %43, %44, %cst_38 {dimension_numbers = #tpu.dot_dimension_numbers<[1], [0], [0], [1], [0, 0, 1, 1], [], []>} : vector<1x4xf32>, vector<4x32xf32>, vector<1x32xf32> -> vector<1x32xf32>
    %c0_39 = arith.constant 0 : index
    %c0_40 = arith.constant 0 : index
    %46 = vector.load %arg6[%c0_39, %c0_40] : memref<1x32xf32, #tpu.memory_space<vmem>>, vector<1x32xf32>
    %47 = arith.mulf %34, %43 : vector<1x4xf32>
    %c0_41 = arith.constant 0 : index
    %c0_42 = arith.constant 0 : index
    %48 = vector.load %arg5[%c0_41, %c0_42] : memref<4x32xf32, #tpu.memory_space<vmem>>, vector<4x32xf32>
    %cst_43 = arith.constant dense<0.000000e+00> : vector<1x32xf32>
    %49 = tpu.matmul %47, %48, %cst_43 {dimension_numbers = #tpu.dot_dimension_numbers<[1], [0], [0], [1], [0, 0, 1, 1], [], []>} : vector<1x4xf32>, vector<4x32xf32>, vector<1x32xf32> -> vector<1x32xf32>
    %50 = arith.subf %46, %49 : vector<1x32xf32>
    %51 = vector.broadcast %45 : vector<1x32xf32> to vector<16x32xf32>
    %52 = arith.mulf %23, %51 : vector<16x32xf32>
    %53 = vector.broadcast %50 : vector<1x32xf32> to vector<16x32xf32>
    %54 = arith.addf %52, %53 : vector<16x32xf32>
    %cst_44 = arith.constant 0.000000e+00 : f32
    %55 = vector.broadcast %cst_44 : f32 to vector<16x32xf32>
    %56 = arith.maximumf %54, %55 : vector<16x32xf32>
    %c0_45 = arith.constant 0 : index
    %c0_46 = arith.constant 0 : index
    %57 = vector.load %arg9[%c0_45, %c0_46] : memref<1x32xf32, #tpu.memory_space<vmem>>, vector<1x32xf32>
    %c0_47 = arith.constant 0 : index
    %c0_48 = arith.constant 0 : index
    %c0_49 = arith.constant 0 : index
    %58 = vector.load %arg8[%c0_47, %c0_48, %c0_49] : memref<3x32x32xf32, #tpu.memory_space<vmem>>, vector<1x32x32xf32>
    %59 = vector.shape_cast %58 : vector<1x32x32xf32> to vector<32x32xf32>
    %cst_50 = arith.constant dense<0.000000e+00> : vector<16x32xf32>
    %60 = tpu.matmul %56, %59, %cst_50 {dimension_numbers = #tpu.dot_dimension_numbers<[1], [0], [0], [1], [0, 0, 1, 1], [], []>} : vector<16x32xf32>, vector<32x32xf32>, vector<16x32xf32> -> vector<16x32xf32>
    %c0_51 = arith.constant 0 : index
    %c0_52 = arith.constant 0 : index
    %c0_53 = arith.constant 0 : index
    %61 = vector.load %arg7[%c0_51, %c0_52, %c0_53] : memref<3x8x16xf32, #tpu.memory_space<vmem>>, vector<1x8x16xf32>
    %62 = vector.shape_cast %61 : vector<1x8x16xf32> to vector<8x16xf32>
    %cst_54 = arith.constant dense<0.000000e+00> : vector<8x32xf32>
    %63 = tpu.matmul %62, %60, %cst_54 {dimension_numbers = #tpu.dot_dimension_numbers<[1], [0], [0], [1], [0, 0, 1, 1], [], []>} : vector<8x16xf32>, vector<16x32xf32>, vector<8x32xf32> -> vector<8x32xf32>
    %64 = vector.broadcast %57 : vector<1x32xf32> to vector<8x32xf32>
    %65 = arith.addf %64, %63 : vector<8x32xf32>
    %c1_55 = arith.constant 1 : index
    %c0_56 = arith.constant 0 : index
    %c0_57 = arith.constant 0 : index
    %66 = vector.load %arg8[%c1_55, %c0_56, %c0_57] : memref<3x32x32xf32, #tpu.memory_space<vmem>>, vector<1x32x32xf32>
    %67 = vector.shape_cast %66 : vector<1x32x32xf32> to vector<32x32xf32>
    %cst_58 = arith.constant dense<0.000000e+00> : vector<16x32xf32>
    %68 = tpu.matmul %56, %67, %cst_58 {dimension_numbers = #tpu.dot_dimension_numbers<[1], [0], [0], [1], [0, 0, 1, 1], [], []>} : vector<16x32xf32>, vector<32x32xf32>, vector<16x32xf32> -> vector<16x32xf32>
    %c1_59 = arith.constant 1 : index
    %c0_60 = arith.constant 0 : index
    %c0_61 = arith.constant 0 : index
    %69 = vector.load %arg7[%c1_59, %c0_60, %c0_61] : memref<3x8x16xf32, #tpu.memory_space<vmem>>, vector<1x8x16xf32>
    %70 = vector.shape_cast %69 : vector<1x8x16xf32> to vector<8x16xf32>
    %cst_62 = arith.constant dense<0.000000e+00> : vector<8x32xf32>
    %71 = tpu.matmul %70, %68, %cst_62 {dimension_numbers = #tpu.dot_dimension_numbers<[1], [0], [0], [1], [0, 0, 1, 1], [], []>} : vector<8x16xf32>, vector<16x32xf32>, vector<8x32xf32> -> vector<8x32xf32>
    %72 = arith.addf %65, %71 : vector<8x32xf32>
    %c2_63 = arith.constant 2 : index
    %c0_64 = arith.constant 0 : index
    %c0_65 = arith.constant 0 : index
    %73 = vector.load %arg8[%c2_63, %c0_64, %c0_65] : memref<3x32x32xf32, #tpu.memory_space<vmem>>, vector<1x32x32xf32>
    %74 = vector.shape_cast %73 : vector<1x32x32xf32> to vector<32x32xf32>
    %cst_66 = arith.constant dense<0.000000e+00> : vector<16x32xf32>
    %75 = tpu.matmul %56, %74, %cst_66 {dimension_numbers = #tpu.dot_dimension_numbers<[1], [0], [0], [1], [0, 0, 1, 1], [], []>} : vector<16x32xf32>, vector<32x32xf32>, vector<16x32xf32> -> vector<16x32xf32>
    %c2_67 = arith.constant 2 : index
    %c0_68 = arith.constant 0 : index
    %c0_69 = arith.constant 0 : index
    %76 = vector.load %arg7[%c2_67, %c0_68, %c0_69] : memref<3x8x16xf32, #tpu.memory_space<vmem>>, vector<1x8x16xf32>
    %77 = vector.shape_cast %76 : vector<1x8x16xf32> to vector<8x16xf32>
    %cst_70 = arith.constant dense<0.000000e+00> : vector<8x32xf32>
    %78 = tpu.matmul %77, %75, %cst_70 {dimension_numbers = #tpu.dot_dimension_numbers<[1], [0], [0], [1], [0, 0, 1, 1], [], []>} : vector<8x16xf32>, vector<16x32xf32>, vector<8x32xf32> -> vector<8x32xf32>
    %79 = arith.addf %72, %78 : vector<8x32xf32>
    %cst_71 = arith.constant dense<0.000000e+00> : vector<32xf32>
    %80 = vector.multi_reduction <add>, %79, %cst_71 [0] : vector<8x32xf32> to vector<32xf32>
    %81 = vector.shape_cast %80 : vector<32xf32> to vector<1x32xf32>
    %cst_72 = arith.constant 8.000000e+00 : f32
    %82 = vector.broadcast %cst_72 : f32 to vector<1x32xf32>
    %83 = arith.divf %81, %82 : vector<1x32xf32>
    %84 = arith.mulf %79, %79 : vector<8x32xf32>
    %cst_73 = arith.constant dense<0.000000e+00> : vector<32xf32>
    %85 = vector.multi_reduction <add>, %84, %cst_73 [0] : vector<8x32xf32> to vector<32xf32>
    %86 = vector.shape_cast %85 : vector<32xf32> to vector<1x32xf32>
    %cst_74 = arith.constant 8.000000e+00 : f32
    %87 = vector.broadcast %cst_74 : f32 to vector<1x32xf32>
    %88 = arith.divf %86, %87 : vector<1x32xf32>
    %c0_75 = arith.constant 0 : index
    %c0_76 = arith.constant 0 : index
    %89 = vector.load %arg10[%c0_75, %c0_76] : memref<32x8xf32, #tpu.memory_space<vmem>>, vector<32x8xf32>
    %cst_77 = arith.constant dense<0.000000e+00> : vector<1x8xf32>
    %90 = tpu.matmul %83, %89, %cst_77 {dimension_numbers = #tpu.dot_dimension_numbers<[1], [0], [0], [1], [0, 0, 1, 1], [], []>} : vector<1x32xf32>, vector<32x8xf32>, vector<1x8xf32> -> vector<1x8xf32>
    %c0_78 = arith.constant 0 : index
    %c0_79 = arith.constant 0 : index
    %91 = vector.load %arg10[%c0_78, %c0_79] : memref<32x8xf32, #tpu.memory_space<vmem>>, vector<32x8xf32>
    %cst_80 = arith.constant dense<0.000000e+00> : vector<1x8xf32>
    %92 = tpu.matmul %88, %91, %cst_80 {dimension_numbers = #tpu.dot_dimension_numbers<[1], [0], [0], [1], [0, 0, 1, 1], [], []>} : vector<1x32xf32>, vector<32x8xf32>, vector<1x8xf32> -> vector<1x8xf32>
    %93 = arith.mulf %90, %90 : vector<1x8xf32>
    %94 = arith.subf %92, %93 : vector<1x8xf32>
    %cst_81 = arith.constant 0.000000e+00 : f32
    %95 = vector.broadcast %cst_81 : f32 to vector<1x8xf32>
    %96 = arith.maximumf %94, %95 : vector<1x8xf32>
    %cst_82 = arith.constant 9.99999974E-6 : f32
    %97 = vector.broadcast %cst_82 : f32 to vector<1x8xf32>
    %98 = arith.addf %96, %97 : vector<1x8xf32>
    %99 = math.rsqrt %98 : vector<1x8xf32>
    %c0_83 = arith.constant 0 : index
    %c0_84 = arith.constant 0 : index
    %100 = vector.load %arg11[%c0_83, %c0_84] : memref<8x32xf32, #tpu.memory_space<vmem>>, vector<8x32xf32>
    %cst_85 = arith.constant dense<0.000000e+00> : vector<1x32xf32>
    %101 = tpu.matmul %99, %100, %cst_85 {dimension_numbers = #tpu.dot_dimension_numbers<[1], [0], [0], [1], [0, 0, 1, 1], [], []>} : vector<1x8xf32>, vector<8x32xf32>, vector<1x32xf32> -> vector<1x32xf32>
    %c0_86 = arith.constant 0 : index
    %c0_87 = arith.constant 0 : index
    %102 = vector.load %arg12[%c0_86, %c0_87] : memref<1x32xf32, #tpu.memory_space<vmem>>, vector<1x32xf32>
    %103 = arith.mulf %90, %99 : vector<1x8xf32>
    %c0_88 = arith.constant 0 : index
    %c0_89 = arith.constant 0 : index
    %104 = vector.load %arg11[%c0_88, %c0_89] : memref<8x32xf32, #tpu.memory_space<vmem>>, vector<8x32xf32>
    %cst_90 = arith.constant dense<0.000000e+00> : vector<1x32xf32>
    %105 = tpu.matmul %103, %104, %cst_90 {dimension_numbers = #tpu.dot_dimension_numbers<[1], [0], [0], [1], [0, 0, 1, 1], [], []>} : vector<1x8xf32>, vector<8x32xf32>, vector<1x32xf32> -> vector<1x32xf32>
    %106 = arith.subf %102, %105 : vector<1x32xf32>
    %107 = vector.broadcast %101 : vector<1x32xf32> to vector<8x32xf32>
    %108 = arith.mulf %79, %107 : vector<8x32xf32>
    %109 = vector.broadcast %106 : vector<1x32xf32> to vector<8x32xf32>
    %110 = arith.addf %108, %109 : vector<8x32xf32>
    %cst_91 = arith.constant 0.000000e+00 : f32
    %111 = vector.broadcast %cst_91 : f32 to vector<8x32xf32>
    %112 = arith.maximumf %110, %111 : vector<8x32xf32>
    %c0_92 = arith.constant 0 : index
    %c0_93 = arith.constant 0 : index
    %113 = vector.load %arg15[%c0_92, %c0_93] : memref<1x32xf32, #tpu.memory_space<vmem>>, vector<1x32xf32>
    %c0_94 = arith.constant 0 : index
    %c0_95 = arith.constant 0 : index
    %c0_96 = arith.constant 0 : index
    %114 = vector.load %arg14[%c0_94, %c0_95, %c0_96] : memref<3x32x32xf32, #tpu.memory_space<vmem>>, vector<1x32x32xf32>
    %115 = vector.shape_cast %114 : vector<1x32x32xf32> to vector<32x32xf32>
    %cst_97 = arith.constant dense<0.000000e+00> : vector<8x32xf32>
    %116 = tpu.matmul %112, %115, %cst_97 {dimension_numbers = #tpu.dot_dimension_numbers<[1], [0], [0], [1], [0, 0, 1, 1], [], []>} : vector<8x32xf32>, vector<32x32xf32>, vector<8x32xf32> -> vector<8x32xf32>
    %c0_98 = arith.constant 0 : index
    %c0_99 = arith.constant 0 : index
    %c0_100 = arith.constant 0 : index
    %117 = vector.load %arg13[%c0_98, %c0_99, %c0_100] : memref<3x4x8xf32, #tpu.memory_space<vmem>>, vector<1x4x8xf32>
    %118 = vector.shape_cast %117 : vector<1x4x8xf32> to vector<4x8xf32>
    %cst_101 = arith.constant dense<0.000000e+00> : vector<4x32xf32>
    %119 = tpu.matmul %118, %116, %cst_101 {dimension_numbers = #tpu.dot_dimension_numbers<[1], [0], [0], [1], [0, 0, 1, 1], [], []>} : vector<4x8xf32>, vector<8x32xf32>, vector<4x32xf32> -> vector<4x32xf32>
    %120 = vector.broadcast %113 : vector<1x32xf32> to vector<4x32xf32>
    %121 = arith.addf %120, %119 : vector<4x32xf32>
    %c1_102 = arith.constant 1 : index
    %c0_103 = arith.constant 0 : index
    %c0_104 = arith.constant 0 : index
    %122 = vector.load %arg14[%c1_102, %c0_103, %c0_104] : memref<3x32x32xf32, #tpu.memory_space<vmem>>, vector<1x32x32xf32>
    %123 = vector.shape_cast %122 : vector<1x32x32xf32> to vector<32x32xf32>
    %cst_105 = arith.constant dense<0.000000e+00> : vector<8x32xf32>
    %124 = tpu.matmul %112, %123, %cst_105 {dimension_numbers = #tpu.dot_dimension_numbers<[1], [0], [0], [1], [0, 0, 1, 1], [], []>} : vector<8x32xf32>, vector<32x32xf32>, vector<8x32xf32> -> vector<8x32xf32>
    %c1_106 = arith.constant 1 : index
    %c0_107 = arith.constant 0 : index
    %c0_108 = arith.constant 0 : index
    %125 = vector.load %arg13[%c1_106, %c0_107, %c0_108] : memref<3x4x8xf32, #tpu.memory_space<vmem>>, vector<1x4x8xf32>
    %126 = vector.shape_cast %125 : vector<1x4x8xf32> to vector<4x8xf32>
    %cst_109 = arith.constant dense<0.000000e+00> : vector<4x32xf32>
    %127 = tpu.matmul %126, %124, %cst_109 {dimension_numbers = #tpu.dot_dimension_numbers<[1], [0], [0], [1], [0, 0, 1, 1], [], []>} : vector<4x8xf32>, vector<8x32xf32>, vector<4x32xf32> -> vector<4x32xf32>
    %128 = arith.addf %121, %127 : vector<4x32xf32>
    %c2_110 = arith.constant 2 : index
    %c0_111 = arith.constant 0 : index
    %c0_112 = arith.constant 0 : index
    %129 = vector.load %arg14[%c2_110, %c0_111, %c0_112] : memref<3x32x32xf32, #tpu.memory_space<vmem>>, vector<1x32x32xf32>
    %130 = vector.shape_cast %129 : vector<1x32x32xf32> to vector<32x32xf32>
    %cst_113 = arith.constant dense<0.000000e+00> : vector<8x32xf32>
    %131 = tpu.matmul %112, %130, %cst_113 {dimension_numbers = #tpu.dot_dimension_numbers<[1], [0], [0], [1], [0, 0, 1, 1], [], []>} : vector<8x32xf32>, vector<32x32xf32>, vector<8x32xf32> -> vector<8x32xf32>
    %c2_114 = arith.constant 2 : index
    %c0_115 = arith.constant 0 : index
    %c0_116 = arith.constant 0 : index
    %132 = vector.load %arg13[%c2_114, %c0_115, %c0_116] : memref<3x4x8xf32, #tpu.memory_space<vmem>>, vector<1x4x8xf32>
    %133 = vector.shape_cast %132 : vector<1x4x8xf32> to vector<4x8xf32>
    %cst_117 = arith.constant dense<0.000000e+00> : vector<4x32xf32>
    %134 = tpu.matmul %133, %131, %cst_117 {dimension_numbers = #tpu.dot_dimension_numbers<[1], [0], [0], [1], [0, 0, 1, 1], [], []>} : vector<4x8xf32>, vector<8x32xf32>, vector<4x32xf32> -> vector<4x32xf32>
    %135 = arith.addf %128, %134 : vector<4x32xf32>
    %cst_118 = arith.constant dense<0.000000e+00> : vector<32xf32>
    %136 = vector.multi_reduction <add>, %135, %cst_118 [0] : vector<4x32xf32> to vector<32xf32>
    %137 = vector.shape_cast %136 : vector<32xf32> to vector<1x32xf32>
    %cst_119 = arith.constant 4.000000e+00 : f32
    %138 = vector.broadcast %cst_119 : f32 to vector<1x32xf32>
    %139 = arith.divf %137, %138 : vector<1x32xf32>
    %140 = arith.mulf %135, %135 : vector<4x32xf32>
    %cst_120 = arith.constant dense<0.000000e+00> : vector<32xf32>
    %141 = vector.multi_reduction <add>, %140, %cst_120 [0] : vector<4x32xf32> to vector<32xf32>
    %142 = vector.shape_cast %141 : vector<32xf32> to vector<1x32xf32>
    %cst_121 = arith.constant 4.000000e+00 : f32
    %143 = vector.broadcast %cst_121 : f32 to vector<1x32xf32>
    %144 = arith.divf %142, %143 : vector<1x32xf32>
    %c0_122 = arith.constant 0 : index
    %c0_123 = arith.constant 0 : index
    %145 = vector.load %arg16[%c0_122, %c0_123] : memref<32x16xf32, #tpu.memory_space<vmem>>, vector<32x16xf32>
    %cst_124 = arith.constant dense<0.000000e+00> : vector<1x16xf32>
    %146 = tpu.matmul %139, %145, %cst_124 {dimension_numbers = #tpu.dot_dimension_numbers<[1], [0], [0], [1], [0, 0, 1, 1], [], []>} : vector<1x32xf32>, vector<32x16xf32>, vector<1x16xf32> -> vector<1x16xf32>
    %c0_125 = arith.constant 0 : index
    %c0_126 = arith.constant 0 : index
    %147 = vector.load %arg16[%c0_125, %c0_126] : memref<32x16xf32, #tpu.memory_space<vmem>>, vector<32x16xf32>
    %cst_127 = arith.constant dense<0.000000e+00> : vector<1x16xf32>
    %148 = tpu.matmul %144, %147, %cst_127 {dimension_numbers = #tpu.dot_dimension_numbers<[1], [0], [0], [1], [0, 0, 1, 1], [], []>} : vector<1x32xf32>, vector<32x16xf32>, vector<1x16xf32> -> vector<1x16xf32>
    %149 = arith.mulf %146, %146 : vector<1x16xf32>
    %150 = arith.subf %148, %149 : vector<1x16xf32>
    %cst_128 = arith.constant 0.000000e+00 : f32
    %151 = vector.broadcast %cst_128 : f32 to vector<1x16xf32>
    %152 = arith.maximumf %150, %151 : vector<1x16xf32>
    %cst_129 = arith.constant 9.99999974E-6 : f32
    %153 = vector.broadcast %cst_129 : f32 to vector<1x16xf32>
    %154 = arith.addf %152, %153 : vector<1x16xf32>
    %155 = math.rsqrt %154 : vector<1x16xf32>
    %c0_130 = arith.constant 0 : index
    %c0_131 = arith.constant 0 : index
    %156 = vector.load %arg17[%c0_130, %c0_131] : memref<16x32xf32, #tpu.memory_space<vmem>>, vector<16x32xf32>
    %cst_132 = arith.constant dense<0.000000e+00> : vector<1x32xf32>
    %157 = tpu.matmul %155, %156, %cst_132 {dimension_numbers = #tpu.dot_dimension_numbers<[1], [0], [0], [1], [0, 0, 1, 1], [], []>} : vector<1x16xf32>, vector<16x32xf32>, vector<1x32xf32> -> vector<1x32xf32>
    %c0_133 = arith.constant 0 : index
    %c0_134 = arith.constant 0 : index
    %158 = vector.load %arg18[%c0_133, %c0_134] : memref<1x32xf32, #tpu.memory_space<vmem>>, vector<1x32xf32>
    %159 = arith.mulf %146, %155 : vector<1x16xf32>
    %c0_135 = arith.constant 0 : index
    %c0_136 = arith.constant 0 : index
    %160 = vector.load %arg17[%c0_135, %c0_136] : memref<16x32xf32, #tpu.memory_space<vmem>>, vector<16x32xf32>
    %cst_137 = arith.constant dense<0.000000e+00> : vector<1x32xf32>
    %161 = tpu.matmul %159, %160, %cst_137 {dimension_numbers = #tpu.dot_dimension_numbers<[1], [0], [0], [1], [0, 0, 1, 1], [], []>} : vector<1x16xf32>, vector<16x32xf32>, vector<1x32xf32> -> vector<1x32xf32>
    %162 = arith.subf %158, %161 : vector<1x32xf32>
    %163 = vector.broadcast %157 : vector<1x32xf32> to vector<4x32xf32>
    %164 = arith.mulf %135, %163 : vector<4x32xf32>
    %165 = vector.broadcast %162 : vector<1x32xf32> to vector<4x32xf32>
    %166 = arith.addf %164, %165 : vector<4x32xf32>
    %cst_138 = arith.constant 0.000000e+00 : f32
    %167 = vector.broadcast %cst_138 : f32 to vector<4x32xf32>
    %168 = arith.maximumf %166, %167 : vector<4x32xf32>
    %c0_139 = arith.constant 0 : index
    %c0_140 = arith.constant 0 : index
    %169 = vector.load %arg19[%c0_139, %c0_140] : memref<32x48xf32, #tpu.memory_space<vmem>>, vector<32x48xf32>
    %cst_141 = arith.constant dense<0.000000e+00> : vector<4x48xf32>
    %170 = tpu.matmul %168, %169, %cst_141 {dimension_numbers = #tpu.dot_dimension_numbers<[1], [0], [0], [1], [0, 0, 1, 1], [], []>} : vector<4x32xf32>, vector<32x48xf32>, vector<4x48xf32> -> vector<4x48xf32>
    %c0_142 = arith.constant 0 : index
    %c0_143 = arith.constant 0 : index
    %171 = vector.load %arg21[%c0_142, %c0_143] : memref<1x48xf32, #tpu.memory_space<vmem>>, vector<1x48xf32>
    %172 = vector.broadcast %171 : vector<1x48xf32> to vector<4x48xf32>
    %173 = arith.addf %170, %172 : vector<4x48xf32>
    %174 = vector.extract_strided_slice %173 {offsets = [0, 0], sizes = [2, 48], strides = [1, 1]} : vector<4x48xf32> to vector<2x48xf32>
    %c0_144 = arith.constant 0 : index
    %c0_145 = arith.constant 0 : index
    %c0_146 = arith.constant 0 : index
    %175 = vector.load %arg35[%c0_144, %c0_145, %c0_146] : memref<2x2x48xf32, #tpu.memory_space<vmem>>, vector<1x2x48xf32>
    %176 = vector.shape_cast %175 : vector<1x2x48xf32> to vector<2x48xf32>
    %177 = vector.shape_cast %174 : vector<2x48xf32> to vector<1x2x48xf32>
    tpu.vector_store %arg35[%c0_144, %c0_145, %c0_146], %177 {strides = array<i32>} : memref<2x2x48xf32, #tpu.memory_space<vmem>>, vector<1x2x48xf32>,
    %178 = vector.extract_strided_slice %173 {offsets = [2, 0], sizes = [2, 48], strides = [1, 1]} : vector<4x48xf32> to vector<2x48xf32>
    %c1_147 = arith.constant 1 : index
    %c0_148 = arith.constant 0 : index
    %c0_149 = arith.constant 0 : index
    %179 = vector.load %arg35[%c1_147, %c0_148, %c0_149] : memref<2x2x48xf32, #tpu.memory_space<vmem>>, vector<1x2x48xf32>
    %180 = vector.shape_cast %179 : vector<1x2x48xf32> to vector<2x48xf32>
    %181 = vector.shape_cast %178 : vector<2x48xf32> to vector<1x2x48xf32>
    tpu.vector_store %arg35[%c1_147, %c0_148, %c0_149], %181 {strides = array<i32>} : memref<2x2x48xf32, #tpu.memory_space<vmem>>, vector<1x2x48xf32>,
    %c0_150 = arith.constant 0 : index
    %c0_151 = arith.constant 0 : index
    %182 = vector.load %arg20[%c0_150, %c0_151] : memref<16x48xf32, #tpu.memory_space<vmem>>, vector<16x48xf32>
    %c0_152 = arith.constant 0 : index
    %c0_153 = arith.constant 0 : index
    %183 = vector.load %arg22[%c0_152, %c0_153] : memref<1x48xf32, #tpu.memory_space<vmem>>, vector<1x48xf32>
    %cst_154 = arith.constant 0.000000e+00 : f32
    %184 = vector.broadcast %cst_154 : f32 to vector<2x16xf32>
    %c0_i32 = arith.constant 0 : i32
    %185 = arith.index_cast %c0_i32 : i32 to index
    %c0_155 = arith.constant 0 : index
    %c0_156 = arith.constant 0 : index
    %186 = vector.load %arg35[%185, %c0_155, %c0_156] : memref<2x2x48xf32, #tpu.memory_space<vmem>>, vector<1x2x48xf32>
    %187 = vector.shape_cast %186 : vector<1x2x48xf32> to vector<2x48xf32>
    %cst_157 = arith.constant dense<0.000000e+00> : vector<2x48xf32>
    %188 = tpu.matmul %184, %182, %cst_157 {dimension_numbers = #tpu.dot_dimension_numbers<[1], [0], [0], [1], [0, 0, 1, 1], [], []>} : vector<2x16xf32>, vector<16x48xf32>, vector<2x48xf32> -> vector<2x48xf32>
    %189 = vector.broadcast %183 : vector<1x48xf32> to vector<2x48xf32>
    %190 = arith.addf %188, %189 : vector<2x48xf32>
    %191 = vector.extract_strided_slice %187 {offsets = [0, 0], sizes = [2, 16], strides = [1, 1]} : vector<2x48xf32> to vector<2x16xf32>
    %192 = vector.extract_strided_slice %190 {offsets = [0, 0], sizes = [2, 16], strides = [1, 1]} : vector<2x48xf32> to vector<2x16xf32>
    %193 = arith.addf %191, %192 : vector<2x16xf32>
    %194 = arith.negf %193 : vector<2x16xf32>
    %195 = math.exp %194 : vector<2x16xf32>
    %cst_158 = arith.constant 1.000000e+00 : f32
    %196 = vector.broadcast %cst_158 : f32 to vector<2x16xf32>
    %197 = arith.addf %196, %195 : vector<2x16xf32>
    %198 = arith.divf %196, %197 : vector<2x16xf32>
    %199 = vector.extract_strided_slice %187 {offsets = [0, 16], sizes = [2, 16], strides = [1, 1]} : vector<2x48xf32> to vector<2x16xf32>
    %200 = vector.extract_strided_slice %190 {offsets = [0, 16], sizes = [2, 16], strides = [1, 1]} : vector<2x48xf32> to vector<2x16xf32>
    %201 = arith.addf %199, %200 : vector<2x16xf32>
    %202 = arith.negf %201 : vector<2x16xf32>
    %203 = math.exp %202 : vector<2x16xf32>
    %cst_159 = arith.constant 1.000000e+00 : f32
    %204 = vector.broadcast %cst_159 : f32 to vector<2x16xf32>
    %205 = arith.addf %204, %203 : vector<2x16xf32>
    %206 = arith.divf %204, %205 : vector<2x16xf32>
    %207 = vector.extract_strided_slice %187 {offsets = [0, 32], sizes = [2, 16], strides = [1, 1]} : vector<2x48xf32> to vector<2x16xf32>
    %208 = vector.extract_strided_slice %190 {offsets = [0, 32], sizes = [2, 16], strides = [1, 1]} : vector<2x48xf32> to vector<2x16xf32>
    %209 = arith.mulf %198, %208 : vector<2x16xf32>
    %210 = arith.addf %207, %209 : vector<2x16xf32>
    %211 = math.tanh %210 : vector<2x16xf32>
    %cst_160 = arith.constant 1.000000e+00 : f32
    %212 = vector.broadcast %cst_160 : f32 to vector<2x16xf32>
    %213 = arith.subf %212, %206 : vector<2x16xf32>
    %214 = arith.mulf %213, %211 : vector<2x16xf32>
    %215 = arith.mulf %206, %184 : vector<2x16xf32>
    %216 = arith.addf %214, %215 : vector<2x16xf32>
    %c1_i32 = arith.constant 1 : i32
    %217 = arith.index_cast %c1_i32 : i32 to index
    %c0_161 = arith.constant 0 : index
    %c0_162 = arith.constant 0 : index
    %218 = vector.load %arg35[%217, %c0_161, %c0_162] : memref<2x2x48xf32, #tpu.memory_space<vmem>>, vector<1x2x48xf32>
    %219 = vector.shape_cast %218 : vector<1x2x48xf32> to vector<2x48xf32>
    %cst_163 = arith.constant dense<0.000000e+00> : vector<2x48xf32>
    %220 = tpu.matmul %216, %182, %cst_163 {dimension_numbers = #tpu.dot_dimension_numbers<[1], [0], [0], [1], [0, 0, 1, 1], [], []>} : vector<2x16xf32>, vector<16x48xf32>, vector<2x48xf32> -> vector<2x48xf32>
    %221 = vector.broadcast %183 : vector<1x48xf32> to vector<2x48xf32>
    %222 = arith.addf %220, %221 : vector<2x48xf32>
    %223 = vector.extract_strided_slice %219 {offsets = [0, 0], sizes = [2, 16], strides = [1, 1]} : vector<2x48xf32> to vector<2x16xf32>
    %224 = vector.extract_strided_slice %222 {offsets = [0, 0], sizes = [2, 16], strides = [1, 1]} : vector<2x48xf32> to vector<2x16xf32>
    %225 = arith.addf %223, %224 : vector<2x16xf32>
    %226 = arith.negf %225 : vector<2x16xf32>
    %227 = math.exp %226 : vector<2x16xf32>
    %cst_164 = arith.constant 1.000000e+00 : f32
    %228 = vector.broadcast %cst_164 : f32 to vector<2x16xf32>
    %229 = arith.addf %228, %227 : vector<2x16xf32>
    %230 = arith.divf %228, %229 : vector<2x16xf32>
    %231 = vector.extract_strided_slice %219 {offsets = [0, 16], sizes = [2, 16], strides = [1, 1]} : vector<2x48xf32> to vector<2x16xf32>
    %232 = vector.extract_strided_slice %222 {offsets = [0, 16], sizes = [2, 16], strides = [1, 1]} : vector<2x48xf32> to vector<2x16xf32>
    %233 = arith.addf %231, %232 : vector<2x16xf32>
    %234 = arith.negf %233 : vector<2x16xf32>
    %235 = math.exp %234 : vector<2x16xf32>
    %cst_165 = arith.constant 1.000000e+00 : f32
    %236 = vector.broadcast %cst_165 : f32 to vector<2x16xf32>
    %237 = arith.addf %236, %235 : vector<2x16xf32>
    %238 = arith.divf %236, %237 : vector<2x16xf32>
    %239 = vector.extract_strided_slice %219 {offsets = [0, 32], sizes = [2, 16], strides = [1, 1]} : vector<2x48xf32> to vector<2x16xf32>
    %240 = vector.extract_strided_slice %222 {offsets = [0, 32], sizes = [2, 16], strides = [1, 1]} : vector<2x48xf32> to vector<2x16xf32>
    %241 = arith.mulf %230, %240 : vector<2x16xf32>
    %242 = arith.addf %239, %241 : vector<2x16xf32>
    %243 = math.tanh %242 : vector<2x16xf32>
    %cst_166 = arith.constant 1.000000e+00 : f32
    %244 = vector.broadcast %cst_166 : f32 to vector<2x16xf32>
    %245 = arith.subf %244, %238 : vector<2x16xf32>
    %246 = arith.mulf %245, %243 : vector<2x16xf32>
    %247 = arith.mulf %238, %216 : vector<2x16xf32>
    %248 = arith.addf %246, %247 : vector<2x16xf32>
    %c2_i32 = arith.constant 2 : i32
    %c0_167 = arith.constant 0 : index
    %c0_168 = arith.constant 0 : index
    %249 = vector.load %arg23[%c0_167, %c0_168] : memref<16x32xf32, #tpu.memory_space<vmem>>, vector<16x32xf32>
    %cst_169 = arith.constant dense<0.000000e+00> : vector<2x32xf32>
    %250 = tpu.matmul %248, %249, %cst_169 {dimension_numbers = #tpu.dot_dimension_numbers<[1], [0], [0], [1], [0, 0, 1, 1], [], []>} : vector<2x16xf32>, vector<16x32xf32>, vector<2x32xf32> -> vector<2x32xf32>
    %c0_170 = arith.constant 0 : index
    %c0_171 = arith.constant 0 : index
    %251 = vector.load %arg24[%c0_170, %c0_171] : memref<32x8xf32, #tpu.memory_space<vmem>>, vector<32x8xf32>
    %c0_172 = arith.constant 0 : index
    %c0_173 = arith.constant 0 : index
    %252 = vector.load %arg25[%c0_172, %c0_173] : memref<8x10xf32, #tpu.memory_space<vmem>>, vector<8x10xf32>
    %253 = math.tanh %252 : vector<8x10xf32>
    %cst_174 = arith.constant dense<0.000000e+00> : vector<32x10xf32>
    %254 = tpu.matmul %251, %253, %cst_174 {dimension_numbers = #tpu.dot_dimension_numbers<[1], [0], [0], [1], [0, 0, 1, 1], [], []>} : vector<32x8xf32>, vector<8x10xf32>, vector<32x10xf32> -> vector<32x10xf32>
    %c0_175 = arith.constant 0 : index
    %c0_176 = arith.constant 0 : index
    %255 = vector.load %arg29[%c0_175, %c0_176] : memref<10x40xf32, #tpu.memory_space<vmem>>, vector<10x40xf32>
    %cst_177 = arith.constant dense<0.000000e+00> : vector<32x40xf32>
    %256 = tpu.matmul %254, %255, %cst_177 {dimension_numbers = #tpu.dot_dimension_numbers<[1], [0], [0], [1], [0, 0, 1, 1], [], []>} : vector<32x10xf32>, vector<10x40xf32>, vector<32x40xf32> -> vector<32x40xf32>
    %c0_178 = arith.constant 0 : index
    %c0_179 = arith.constant 0 : index
    %257 = vector.load %arg28[%c0_178, %c0_179] : memref<32x40xf32, #tpu.memory_space<vmem>>, vector<32x40xf32>
    %258 = arith.mulf %256, %257 : vector<32x40xf32>
    %cst_180 = arith.constant dense<0.000000e+00> : vector<2x40xf32>
    %259 = tpu.matmul %250, %258, %cst_180 {dimension_numbers = #tpu.dot_dimension_numbers<[1], [0], [0], [1], [0, 0, 1, 1], [], []>} : vector<2x32xf32>, vector<32x40xf32>, vector<2x40xf32> -> vector<2x40xf32>
    %cst_181 = arith.constant 0.353553385 : f32
    %260 = vector.broadcast %cst_181 : f32 to vector<2x40xf32>
    %261 = arith.mulf %259, %260 : vector<2x40xf32>
    %cst_182 = arith.constant dense<0xFF800000> : vector<2xf32>
    %262 = vector.multi_reduction <maximumf>, %261, %cst_182 [1] : vector<2x40xf32> to vector<2xf32>
    %263 = vector.shape_cast %262 : vector<2xf32> to vector<2x1xf32>
    %264 = vector.broadcast %263 : vector<2x1xf32> to vector<2x40xf32>
    %265 = arith.subf %261, %264 : vector<2x40xf32>
    %266 = math.exp %265 : vector<2x40xf32>
    %c0_183 = arith.constant 0 : index
    %c0_184 = arith.constant 0 : index
    %267 = vector.load %arg31[%c0_183, %c0_184] : memref<40x4xf32, #tpu.memory_space<vmem>>, vector<40x4xf32>
    %cst_185 = arith.constant dense<0.000000e+00> : vector<2x4xf32>
    %268 = tpu.matmul %266, %267, %cst_185 {dimension_numbers = #tpu.dot_dimension_numbers<[1], [0], [0], [1], [0, 0, 1, 1], [], []>} : vector<2x40xf32>, vector<40x4xf32>, vector<2x4xf32> -> vector<2x4xf32>
    %c0_186 = arith.constant 0 : index
    %c0_187 = arith.constant 0 : index
    %269 = vector.load %arg32[%c0_186, %c0_187] : memref<4x40xf32, #tpu.memory_space<vmem>>, vector<4x40xf32>
    %cst_188 = arith.constant dense<0.000000e+00> : vector<2x40xf32>
    %270 = tpu.matmul %268, %269, %cst_188 {dimension_numbers = #tpu.dot_dimension_numbers<[1], [0], [0], [1], [0, 0, 1, 1], [], []>} : vector<2x4xf32>, vector<4x40xf32>, vector<2x40xf32> -> vector<2x40xf32>
    %271 = arith.divf %266, %270 : vector<2x40xf32>
    %c0_189 = arith.constant 0 : index
    %c0_190 = arith.constant 0 : index
    %272 = vector.load %arg26[%c0_189, %c0_190] : memref<10x8xf32, #tpu.memory_space<vmem>>, vector<10x8xf32>
    %273 = math.tanh %272 : vector<10x8xf32>
    %c0_191 = arith.constant 0 : index
    %c0_192 = arith.constant 0 : index
    %274 = vector.load %arg27[%c0_191, %c0_192] : memref<8x32xf32, #tpu.memory_space<vmem>>, vector<8x32xf32>
    %cst_193 = arith.constant dense<0.000000e+00> : vector<10x32xf32>
    %275 = tpu.matmul %273, %274, %cst_193 {dimension_numbers = #tpu.dot_dimension_numbers<[1], [0], [0], [1], [0, 0, 1, 1], [], []>} : vector<10x8xf32>, vector<8x32xf32>, vector<10x32xf32> -> vector<10x32xf32>
    %c0_194 = arith.constant 0 : index
    %c0_195 = arith.constant 0 : index
    %276 = vector.load %arg30[%c0_194, %c0_195] : memref<40x10xf32, #tpu.memory_space<vmem>>, vector<40x10xf32>
    %cst_196 = arith.constant dense<0.000000e+00> : vector<40x32xf32>
    %277 = tpu.matmul %276, %275, %cst_196 {dimension_numbers = #tpu.dot_dimension_numbers<[1], [0], [0], [1], [0, 0, 1, 1], [], []>} : vector<40x10xf32>, vector<10x32xf32>, vector<40x32xf32> -> vector<40x32xf32>
    %c0_197 = arith.constant 0 : index
    %c0_198 = arith.constant 0 : index
    %278 = vector.load %arg33[%c0_197, %c0_198] : memref<40x32xf32, #tpu.memory_space<vmem>>, vector<40x32xf32>
    %279 = arith.mulf %277, %278 : vector<40x32xf32>
    %cst_199 = arith.constant dense<0.000000e+00> : vector<2x32xf32>
    %280 = tpu.matmul %271, %279, %cst_199 {dimension_numbers = #tpu.dot_dimension_numbers<[1], [0], [0], [1], [0, 0, 1, 1], [], []>} : vector<2x40xf32>, vector<40x32xf32>, vector<2x32xf32> -> vector<2x32xf32>
    %c0_200 = arith.constant 0 : index
    %c0_201 = arith.constant 0 : index
    %281 = vector.load %arg34[%c0_200, %c0_201] : memref<2x32xf32, #tpu.memory_space<vmem>>, vector<2x32xf32>
    tpu.vector_store %arg34[%c0_200, %c0_201], %280 {strides = array<i32>} : memref<2x32xf32, #tpu.memory_space<vmem>>, vector<2x32xf32>,
    return
  }
}

</mosaic_0001>

<llo_original>
// kernel: tile.33
$region0: #{tile.33}
  #allocation0 [shape = 's32[1]{0}', space=sflag, size = 0x4, scoped, tag = 'scoped memory for tile.33']
  %s0 = inlined_call_operand.vmem [shape: f32[4], index: 0, kind: input, shape index: {}]
  %s1 = inlined_call_operand.vmem [shape: f32[8,4], index: 1, kind: output, shape index: {}]
  // Predicated region
  $region2: #{tile.33} parent=0 // pred_check
    _
  $region3: #{tile.33} parent=0 // pred_check_branch
    %3 = sbr.rel (0) target = $region5
  $region4: #{tile.33} parent=0 // pred_region
    _
  $region5: #{tile.33} parent=0 // pred_fallthru
    _
  %v4 = vld [vmem:[%s0] ss:$0 sm:$0xff]
  %5 = vst [vmem:[%s1] sm:$0xff] %v4

// kernel: tile.34
$region0: #{tile.34}
  %s0 = inlined_call_operand.vmem [shape: f32[8,4], index: 0, kind: input, shape index: {}]
  %s1 = inlined_call_operand.vmem [shape: f32[1,32], index: 1, kind: output, shape index: {}]
  $region1: #{tile.34} parent=0
    #allocation0 [shape = 'u8[4096]{0}', space=vmem, size = 0x1000, scoped, tag = 'scoped mem for output reshape']
    %v2 = vld [vmem:[%s0] sm:$0x1]
    %vm3 = vcmask 31744
    %4 = vst.msk [vmem:[#allocation0] sm:$0x1] %vm3, %v2
    %s5 = scalar_lea.vmem %s0, 7
    %v6 = vld [vmem:[%s5] sm:$0x1]
    %7 = vrot.lane.b32.xlu0 %v6, 28
    %v8 = vpop.permute.xlu0 %7
    %vm9 = vcmask 261344
    %10 = vst.msk [vmem:[#allocation0] sm:$0x1] %vm9, %v8
    %s11 = scalar_lea.vmem %s0, 6
    %v12 = vld [vmem:[%s11] sm:$0x1]
    %13 = vrot.lane.b32.xlu0 %v12, 24
    %v14 = vpop.permute.xlu0 %13
    %vm15 = vcmask 228544
    %16 = vst.msk [vmem:[#allocation0] sm:$0x1] %vm15, %v14
    %s17 = scalar_lea.vmem %s0, 5
    %v18 = vld [vmem:[%s17] sm:$0x1]
    %19 = vrot.lane.b32.xlu0 %v18, 20
    %v20 = vpop.permute.xlu0 %19
    %vm21 = vcmask 195744
    %22 = vst.msk [vmem:[#allocation0] sm:$0x1] %vm21, %v20
    %s23 = scalar_lea.vmem %s0, 4
    %v24 = vld [vmem:[%s23] sm:$0x1]
    %25 = vrot.lane.b32.xlu0 %v24, 16
    %v26 = vpop.permute.xlu0 %25
    %vm27 = vcmask 162944
    %28 = vst.msk [vmem:[#allocation0] sm:$0x1] %vm27, %v26
    %s29 = scalar_lea.vmem %s0, 3
    %v30 = vld [vmem:[%s29] sm:$0x1]
    %31 = vrot.lane.b32.xlu0 %v30, 12
    %v32 = vpop.permute.xlu0 %31
    %vm33 = vcmask 130144
    %34 = vst.msk [vmem:[#allocation0] sm:$0x1] %vm33, %v32
    %s35 = scalar_lea.vmem %s0, 2
    %v36 = vld [vmem:[%s35] sm:$0x1]
    %37 = vrot.lane.b32.xlu0 %v36, 8
    %v38 = vpop.permute.xlu0 %37
    %vm39 = vcmask 97344
    %40 = vst.msk [vmem:[#allocation0] sm:$0x1] %vm39, %v38
    %s41 = scalar_lea.vmem %s0, 1
    %v42 = vld [vmem:[%s41] sm:$0x1]
    %43 = vrot.lane.b32.xlu0 %v42, 4
    %v44 = vpop.permute.xlu0 %43
    %vm45 = vcmask 64544
    %46 = vst.msk [vmem:[#allocation0] sm:$0x1] %vm45, %v44
    %s48 = ssub.s32 2, 1
    %v49 = vld [vmem:[#allocation0] sm:%s48]
    %s51 = ssub.s32 2, 1
    %52 = vst [vmem:[%s1] sm:%s51] %v49

// kernel: tile.43
$region0: #{tile.43}
  #allocation0 [shape = 's32[1]{0}', space=sflag, size = 0x4, scoped, tag = 'scoped memory for tile.43']
  %s0 = inlined_call_operand.vmem [shape: f32[8], index: 0, kind: input, shape index: {}]
  %s1 = inlined_call_operand.vmem [shape: f32[4,8], index: 1, kind: output, shape index: {}]
  // Predicated region
  $region2: #{tile.43} parent=0 // pred_check
    _
  $region3: #{tile.43} parent=0 // pred_check_branch
    %3 = sbr.rel (0) target = $region5
  $region4: #{tile.43} parent=0 // pred_region
    _
  $region5: #{tile.43} parent=0 // pred_fallthru
    _
  %v4 = vld [vmem:[%s0] ss:$0 sm:$0xff]
  %5 = vst [vmem:[%s1] sm:$0xf] %v4

// kernel: tile.44
$region0: #{tile.44}
  %s0 = inlined_call_operand.vmem [shape: f32[4,8], index: 0, kind: input, shape index: {}]
  %s1 = inlined_call_operand.vmem [shape: f32[1,32], index: 1, kind: output, shape index: {}]
  $region1: #{tile.44} parent=0
    #allocation0 [shape = 'u8[4096]{0}', space=vmem, size = 0x1000, scoped, tag = 'scoped mem for output reshape']
    #allocation1 [shape = 'u8[4096]{0}', space=vmem, size = 0x1000, scoped, tag = 'scoped mem for input reshape']
    %s3 = ssub.s32 16, 1
    %v4 = vld [vmem:[%s0] sm:%s3]
    %5 = vst [vmem:[#allocation1] sm:%s3] %v4
    %v6 = vld [vmem:[#allocation1] sm:$0x1]
    %vm7 = vcmask 64512
    %8 = vst.msk [vmem:[#allocation0] sm:$0x1] %vm7, %v6
    %s9 = scalar_lea.vmem [#allocation1], 3
    %v10 = vld [vmem:[%s9] sm:$0x1]
    %11 = vrot.lane.b32.xlu0 %v10, 24
    %v12 = vpop.permute.xlu0 %11
    %vm13 = vcmask 261312
    %14 = vst.msk [vmem:[#allocation0] sm:$0x1] %vm13, %v12
    %s15 = scalar_lea.vmem [#allocation1], 2
    %v16 = vld [vmem:[%s15] sm:$0x1]
    %17 = vrot.lane.b32.xlu0 %v16, 16
    %v18 = vpop.permute.xlu0 %17
    %vm19 = vcmask 195712
    %20 = vst.msk [vmem:[#allocation0] sm:$0x1] %vm19, %v18
    %s21 = scalar_lea.vmem [#allocation1], 1
    %v22 = vld [vmem:[%s21] sm:$0x1]
    %23 = vrot.lane.b32.xlu0 %v22, 8
    %v24 = vpop.permute.xlu0 %23
    %vm25 = vcmask 130112
    %26 = vst.msk [vmem:[#allocation0] sm:$0x1] %vm25, %v24
    %s28 = ssub.s32 2, 1
    %v29 = vld [vmem:[#allocation0] sm:%s28]
    %s31 = ssub.s32 2, 1
    %32 = vst [vmem:[%s1] sm:%s31] %v29

// kernel: tile.53
$region0: #{tile.53}
  #allocation0 [shape = 's32[1]{0}', space=sflag, size = 0x4, scoped, tag = 'scoped memory for tile.53']
  %s0 = inlined_call_operand.vmem [shape: f32[16], index: 0, kind: input, shape index: {}]
  %s1 = inlined_call_operand.vmem [shape: f32[2,16], index: 1, kind: output, shape index: {}]
  // Predicated region
  $region2: #{tile.53} parent=0 // pred_check
    _
  $region3: #{tile.53} parent=0 // pred_check_branch
    %3 = sbr.rel (0) target = $region5
  $region4: #{tile.53} parent=0 // pred_region
    _
  $region5: #{tile.53} parent=0 // pred_fallthru
    _
  %v4 = vld [vmem:[%s0] ss:$0 sm:$0xff]
  %5 = vst [vmem:[%s1] sm:$0x3] %v4

// kernel: tile.54
$region0: #{tile.54}
  %s0 = inlined_call_operand.vmem [shape: f32[2,16], index: 0, kind: input, shape index: {}]
  %s1 = inlined_call_operand.vmem [shape: f32[1,32], index: 1, kind: output, shape index: {}]
  $region1: #{tile.54} parent=0
    #allocation0 [shape = 'u8[4096]{0}', space=vmem, size = 0x1000, scoped, tag = 'scoped mem for output reshape']
    #allocation1 [shape = 'u8[4096]{0}', space=vmem, size = 0x1000, scoped, tag = 'scoped mem for input reshape']
    %s3 = ssub.s32 4, 1
    %v4 = vld [vmem:[%s0] sm:%s3]
    %5 = vst [vmem:[#allocation1] sm:%s3] %v4
    %v6 = vld [vmem:[#allocation1] sm:$0x1]
    %vm7 = vcmask 130048
    %8 = vst.msk [vmem:[#allocation0] sm:$0x1] %vm7, %v6
    %s9 = scalar_lea.vmem [#allocation1], 1
    %v10 = vld [vmem:[%s9] sm:$0x1]
    %11 = vrot.lane.b32.xlu0 %v10, 16
    %v12 = vpop.permute.xlu0 %11
    %vm13 = vcmask 261248
    %14 = vst.msk [vmem:[#allocation0] sm:$0x1] %vm13, %v12
    %s16 = ssub.s32 2, 1
    %v17 = vld [vmem:[#allocation0] sm:%s16]
    %s19 = ssub.s32 2, 1
    %20 = vst [vmem:[%s1] sm:%s19] %v17

// kernel: gst_forward.1
$region0: #{gst_forward.1}
  #allocation0 [shape = 'u32[]', space=smem, size = 0x4, offset = 0x4, fixed_abs, tag = 'smem constant byte address 0x4 - core index']
  #allocation1 [shape = 'u32[72,128]{1,0:T(1,128)}', space=vmem, size = 0x9000, scoped, tag = 'internal scratch']
  #allocation2 [shape = 'f32[2,2,48]{2,1,0:T(2,128)}', space=vmem, size = 0x800, scoped, tag = 'scratch operand']
  %s0 = inlined_call_operand.smem [shape: u32[35], index: -1, kind: input, shape index: {}]
  %s1 = sld [smem:[%s0]]
  %s2 = scalar_lea.smem %s0, 1
  %s3 = sld [smem:[%s2]]
  %s4 = scalar_lea.smem %s0, 2
  %s5 = sld [smem:[%s4]]
  %s6 = scalar_lea.smem %s0, 3
  %s7 = sld [smem:[%s6]]
  %s8 = scalar_lea.smem %s0, 4
  %s9 = sld [smem:[%s8]]
  %s10 = scalar_lea.smem %s0, 5
  %s11 = sld [smem:[%s10]]
  %s12 = scalar_lea.smem %s0, 6
  %s13 = sld [smem:[%s12]]
  %s14 = scalar_lea.smem %s0, 7
  %s15 = sld [smem:[%s14]]
  %s16 = scalar_lea.smem %s0, 8
  %s17 = sld [smem:[%s16]]
  %s18 = scalar_lea.smem %s0, 9
  %s19 = sld [smem:[%s18]]
  %s20 = scalar_lea.smem %s0, 10
  %s21 = sld [smem:[%s20]]
  %s22 = scalar_lea.smem %s0, 11
  %s23 = sld [smem:[%s22]]
  %s24 = scalar_lea.smem %s0, 12
  %s25 = sld [smem:[%s24]]
  %s26 = scalar_lea.smem %s0, 13
  %s27 = sld [smem:[%s26]]
  %s28 = scalar_lea.smem %s0, 14
  %s29 = sld [smem:[%s28]]
  %s30 = scalar_lea.smem %s0, 15
  %s31 = sld [smem:[%s30]]
  %s32 = scalar_lea.smem %s0, 16
  %s33 = sld [smem:[%s32]]
  %s34 = scalar_lea.smem %s0, 17
  %s35 = sld [smem:[%s34]]
  %s36 = scalar_lea.smem %s0, 18
  %s37 = sld [smem:[%s36]]
  %s38 = scalar_lea.smem %s0, 19
  %s39 = sld [smem:[%s38]]
  %s40 = scalar_lea.smem %s0, 20
  %s41 = sld [smem:[%s40]]
  %s42 = scalar_lea.smem %s0, 21
  %s43 = sld [smem:[%s42]]
  %s44 = scalar_lea.smem %s0, 22
  %s45 = sld [smem:[%s44]]
  %s46 = scalar_lea.smem %s0, 23
  %s47 = sld [smem:[%s46]]
  %s48 = scalar_lea.smem %s0, 24
  %s49 = sld [smem:[%s48]]
  %s50 = scalar_lea.smem %s0, 25
  %s51 = sld [smem:[%s50]]
  %s52 = scalar_lea.smem %s0, 26
  %s53 = sld [smem:[%s52]]
  %s54 = scalar_lea.smem %s0, 27
  %s55 = sld [smem:[%s54]]
  %s56 = scalar_lea.smem %s0, 28
  %s57 = sld [smem:[%s56]]
  %s58 = scalar_lea.smem %s0, 29
  %s59 = sld [smem:[%s58]]
  %s60 = scalar_lea.smem %s0, 30
  %s61 = sld [smem:[%s60]]
  %s62 = scalar_lea.smem %s0, 31
  %s63 = sld [smem:[%s62]]
  %s64 = scalar_lea.smem %s0, 32
  %s65 = sld [smem:[%s64]]
  %s66 = scalar_lea.smem %s0, 33
  %s67 = sld [smem:[%s66]]
  %s68 = scalar_lea.smem %s0, 34
  %s69 = sld [smem:[%s68]]
  %s70 = sld [smem:[#allocation0]]
  $region146: #{gst_forward.1} parent=0
    _
  %s72 = ssub.s32 1, %s70
  %s73 = scalar_select 0, %s72, %s70
  $region1: #{gst_forward.1} parent=0
    #allocation3 [shape = 'u8[1024]{0}', space=vmem, size = 0x400, scoped, tag = 'output window, operand 0, single buffered']
    #allocation4 [shape = 's32[1]{0}', space=sflag, size = 0x4, scoped, tag = 'scoped memory for gst_forward.1']
    %74 = vsyncpa [#allocation4], 0
    // Predicated region
    $region2: #{gst_forward.1} parent=1 // pred_check
      _
    $region3: #{gst_forward.1} parent=1 // pred_check_branch
      %76 = sbr.rel (0) target = $region5
    $region4: #{gst_forward.1} parent=1 // pred_region
      _
    $region5: #{gst_forward.1} parent=1 // pred_fallthru
      _
    // Predicated region
    $region6: #{gst_forward.1} parent=1 // pred_check
      _
    $region7: #{gst_forward.1} parent=1 // pred_check_branch
      %78 = sbr.rel (0) target = $region9
    $region8: #{gst_forward.1} parent=1 // pred_region
      _
    $region9: #{gst_forward.1} parent=1 // pred_fallthru
      _
    // Predicated region
    $region10: #{gst_forward.1} parent=1 // pred_check
      _
    $region11: #{gst_forward.1} parent=1 // pred_check_branch
      %80 = sbr.rel (0) target = $region13
    $region12: #{gst_forward.1} parent=1 // pred_region
      _
    $region13: #{gst_forward.1} parent=1 // pred_fallthru
      _
    // Predicated region
    $region14: #{gst_forward.1} parent=1 // pred_check
      _
    $region15: #{gst_forward.1} parent=1 // pred_check_branch
      %82 = sbr.rel (0) target = $region17
    $region16: #{gst_forward.1} parent=1 // pred_region
      _
    $region17: #{gst_forward.1} parent=1 // pred_fallthru
      _
    // Predicated region
    $region18: #{gst_forward.1} parent=1 // pred_check
      _
    $region19: #{gst_forward.1} parent=1 // pred_check_branch
      %84 = sbr.rel (0) target = $region21
    $region20: #{gst_forward.1} parent=1 // pred_region
      _
    $region21: #{gst_forward.1} parent=1 // pred_fallthru
      _
    // Predicated region
    $region22: #{gst_forward.1} parent=1 // pred_check
      _
    $region23: #{gst_forward.1} parent=1 // pred_check_branch
      %86 = sbr.rel (0) target = $region25
    $region24: #{gst_forward.1} parent=1 // pred_region
      _
    $region25: #{gst_forward.1} parent=1 // pred_fallthru
      _
    // Predicated region
    $region26: #{gst_forward.1} parent=1 // pred_check
      _
    $region27: #{gst_forward.1} parent=1 // pred_check_branch
      %88 = sbr.rel (0) target = $region29
    $region28: #{gst_forward.1} parent=1 // pred_region
      _
    $region29: #{gst_forward.1} parent=1 // pred_fallthru
      _
    // Predicated region
    $region30: #{gst_forward.1} parent=1 // pred_check
      _
    $region31: #{gst_forward.1} parent=1 // pred_check_branch
      %90 = sbr.rel (0) target = $region33
    $region32: #{gst_forward.1} parent=1 // pred_region
      _
    $region33: #{gst_forward.1} parent=1 // pred_fallthru
      _
    // Predicated region
    $region34: #{gst_forward.1} parent=1 // pred_check
      _
    $region35: #{gst_forward.1} parent=1 // pred_check_branch
      %92 = sbr.rel (0) target = $region37
    $region36: #{gst_forward.1} parent=1 // pred_region
      _
    $region37: #{gst_forward.1} parent=1 // pred_fallthru
      _
    // Predicated region
    $region38: #{gst_forward.1} parent=1 // pred_check
      _
    $region39: #{gst_forward.1} parent=1 // pred_check_branch
      %94 = sbr.rel (0) target = $region41
    $region40: #{gst_forward.1} parent=1 // pred_region
      _
    $region41: #{gst_forward.1} parent=1 // pred_fallthru
      _
    // Predicated region
    $region42: #{gst_forward.1} parent=1 // pred_check
      _
    $region43: #{gst_forward.1} parent=1 // pred_check_branch
      %96 = sbr.rel (0) target = $region45
    $region44: #{gst_forward.1} parent=1 // pred_region
      _
    $region45: #{gst_forward.1} parent=1 // pred_fallthru
      _
    // Predicated region
    $region46: #{gst_forward.1} parent=1 // pred_check
      _
    $region47: #{gst_forward.1} parent=1 // pred_check_branch
      %98 = sbr.rel (0) target = $region49
    $region48: #{gst_forward.1} parent=1 // pred_region
      _
    $region49: #{gst_forward.1} parent=1 // pred_fallthru
      _
    // Predicated region
    $region50: #{gst_forward.1} parent=1 // pred_check
      _
    $region51: #{gst_forward.1} parent=1 // pred_check_branch
      %100 = sbr.rel (0) target = $region53
    $region52: #{gst_forward.1} parent=1 // pred_region
      _
    $region53: #{gst_forward.1} parent=1 // pred_fallthru
      _
    // Predicated region
    $region54: #{gst_forward.1} parent=1 // pred_check
      _
    $region55: #{gst_forward.1} parent=1 // pred_check_branch
      %102 = sbr.rel (0) target = $region57
    $region56: #{gst_forward.1} parent=1 // pred_region
      _
    $region57: #{gst_forward.1} parent=1 // pred_fallthru
      _
    // Predicated region
    $region58: #{gst_forward.1} parent=1 // pred_check
      _
    $region59: #{gst_forward.1} parent=1 // pred_check_branch
      %104 = sbr.rel (0) target = $region61
    $region60: #{gst_forward.1} parent=1 // pred_region
      _
    $region61: #{gst_forward.1} parent=1 // pred_fallthru
      _
    // Predicated region
    $region62: #{gst_forward.1} parent=1 // pred_check
      _
    $region63: #{gst_forward.1} parent=1 // pred_check_branch
      %106 = sbr.rel (0) target = $region65
    $region64: #{gst_forward.1} parent=1 // pred_region
      _
    $region65: #{gst_forward.1} parent=1 // pred_fallthru
      _
    // Predicated region
    $region66: #{gst_forward.1} parent=1 // pred_check
      _
    $region67: #{gst_forward.1} parent=1 // pred_check_branch
      %108 = sbr.rel (0) target = $region69
    $region68: #{gst_forward.1} parent=1 // pred_region
      _
    $region69: #{gst_forward.1} parent=1 // pred_fallthru
      _
    // Predicated region
    $region70: #{gst_forward.1} parent=1 // pred_check
      _
    $region71: #{gst_forward.1} parent=1 // pred_check_branch
      %110 = sbr.rel (0) target = $region73
    $region72: #{gst_forward.1} parent=1 // pred_region
      _
    $region73: #{gst_forward.1} parent=1 // pred_fallthru
      _
    // Predicated region
    $region74: #{gst_forward.1} parent=1 // pred_check
      _
    $region75: #{gst_forward.1} parent=1 // pred_check_branch
      %112 = sbr.rel (0) target = $region77
    $region76: #{gst_forward.1} parent=1 // pred_region
      _
    $region77: #{gst_forward.1} parent=1 // pred_fallthru
      _
    // Predicated region
    $region78: #{gst_forward.1} parent=1 // pred_check
      _
    $region79: #{gst_forward.1} parent=1 // pred_check_branch
      %114 = sbr.rel (0) target = $region81
    $region80: #{gst_forward.1} parent=1 // pred_region
      _
    $region81: #{gst_forward.1} parent=1 // pred_fallthru
      _
    // Predicated region
    $region82: #{gst_forward.1} parent=1 // pred_check
      _
    $region83: #{gst_forward.1} parent=1 // pred_check_branch
      %116 = sbr.rel (0) target = $region85
    $region84: #{gst_forward.1} parent=1 // pred_region
      _
    $region85: #{gst_forward.1} parent=1 // pred_fallthru
      _
    // Predicated region
    $region86: #{gst_forward.1} parent=1 // pred_check
      _
    $region87: #{gst_forward.1} parent=1 // pred_check_branch
      %118 = sbr.rel (0) target = $region89
    $region88: #{gst_forward.1} parent=1 // pred_region
      _
    $region89: #{gst_forward.1} parent=1 // pred_fallthru
      _
    // Predicated region
    $region90: #{gst_forward.1} parent=1 // pred_check
      _
    $region91: #{gst_forward.1} parent=1 // pred_check_branch
      %120 = sbr.rel (0) target = $region93
    $region92: #{gst_forward.1} parent=1 // pred_region
      _
    $region93: #{gst_forward.1} parent=1 // pred_fallthru
      _
    // Predicated region
    $region94: #{gst_forward.1} parent=1 // pred_check
      _
    $region95: #{gst_forward.1} parent=1 // pred_check_branch
      %122 = sbr.rel (0) target = $region97
    $region96: #{gst_forward.1} parent=1 // pred_region
      _
    $region97: #{gst_forward.1} parent=1 // pred_fallthru
      _
    // Predicated region
    $region98: #{gst_forward.1} parent=1 // pred_check
      _
    $region99: #{gst_forward.1} parent=1 // pred_check_branch
      %124 = sbr.rel (0) target = $region101
    $region100: #{gst_forward.1} parent=1 // pred_region
      _
    $region101: #{gst_forward.1} parent=1 // pred_fallthru
      _
    // Predicated region
    $region102: #{gst_forward.1} parent=1 // pred_check
      _
    $region103: #{gst_forward.1} parent=1 // pred_check_branch
      %126 = sbr.rel (0) target = $region105
    $region104: #{gst_forward.1} parent=1 // pred_region
      _
    $region105: #{gst_forward.1} parent=1 // pred_fallthru
      _
    // Predicated region
    $region106: #{gst_forward.1} parent=1 // pred_check
      _
    $region107: #{gst_forward.1} parent=1 // pred_check_branch
      %128 = sbr.rel (0) target = $region109
    $region108: #{gst_forward.1} parent=1 // pred_region
      _
    $region109: #{gst_forward.1} parent=1 // pred_fallthru
      _
    // Predicated region
    $region110: #{gst_forward.1} parent=1 // pred_check
      _
    $region111: #{gst_forward.1} parent=1 // pred_check_branch
      %130 = sbr.rel (0) target = $region113
    $region112: #{gst_forward.1} parent=1 // pred_region
      _
    $region113: #{gst_forward.1} parent=1 // pred_fallthru
      _
    // Predicated region
    $region114: #{gst_forward.1} parent=1 // pred_check
      _
    $region115: #{gst_forward.1} parent=1 // pred_check_branch
      %132 = sbr.rel (0) target = $region117
    $region116: #{gst_forward.1} parent=1 // pred_region
      _
    $region117: #{gst_forward.1} parent=1 // pred_fallthru
      _
    // Predicated region
    $region118: #{gst_forward.1} parent=1 // pred_check
      _
    $region119: #{gst_forward.1} parent=1 // pred_check_branch
      %134 = sbr.rel (0) target = $region121
    $region120: #{gst_forward.1} parent=1 // pred_region
      _
    $region121: #{gst_forward.1} parent=1 // pred_fallthru
      _
    // Predicated region
    $region122: #{gst_forward.1} parent=1 // pred_check
      _
    $region123: #{gst_forward.1} parent=1 // pred_check_branch
      %136 = sbr.rel (0) target = $region125
    $region124: #{gst_forward.1} parent=1 // pred_region
      _
    $region125: #{gst_forward.1} parent=1 // pred_fallthru
      _
    // Predicated region
    $region126: #{gst_forward.1} parent=1 // pred_check
      _
    $region127: #{gst_forward.1} parent=1 // pred_check_branch
      %138 = sbr.rel (0) target = $region129
    $region128: #{gst_forward.1} parent=1 // pred_region
      _
    $region129: #{gst_forward.1} parent=1 // pred_fallthru
      _
    // Predicated region
    $region130: #{gst_forward.1} parent=1 // pred_check
      _
    $region131: #{gst_forward.1} parent=1 // pred_check_branch
      %140 = sbr.rel (0) target = $region133
    $region132: #{gst_forward.1} parent=1 // pred_region
      _
    $region133: #{gst_forward.1} parent=1 // pred_fallthru
      _
    // Predicated region
    $region134: #{gst_forward.1} parent=1 // pred_check
      _
    $region135: #{gst_forward.1} parent=1 // pred_check_branch
      %142 = sbr.rel (0) target = $region137
    $region136: #{gst_forward.1} parent=1 // pred_region
      _
    $region137: #{gst_forward.1} parent=1 // pred_fallthru
      _
    %v143 = vld [vmem:[%s1] sm:$0xff]
    %v144 = vld [vmem:[%s1 + $0x8] sm:$0xff]
    %v145 = vld [vmem:[%s1 + $0x10] sm:$0xff]
    %v146 = vld [vmem:[%s1 + $0x18] sm:$0xff]
    %v147 = vld [vmem:[%s7] sm:$0x1]
    %v148 = vld [vmem:[%s5] sm:$0xff]
    %v149 = vld [vmem:[%s5 + $0x8] sm:$0xff]
    %vm150 = vcmask 130048
    %v152 = vsel %vm150, %v143, 0
    %v155 = vsel %vm150, %v144, 0
    %v158 = vsel %vm150, %v145, 0
    %v161 = vsel %vm150, %v146, 0
    %163 = vmatpush.msra.mxu0 0.0
    %164 = vmatpush.msra.mxu0 0.0
    %165 = vmatpush.msra.mxu0 0.0
    %166 = vmatpush.msra.mxu0 0.0
    %167 = vmatpush.msra.mxu0 0.0
    %168 = vmatpush.msra.mxu0 0.0
    %169 = vmatpush.msra.mxu0 0.0
    %170 = vmatpush.msra.mxu0 0.0
    %171 = vmatpush.msra.mxu0 0.0
    %172 = vmatpush.msra.mxu0 0.0
    %173 = vmatpush.msra.mxu0 0.0
    %174 = vmatpush.msra.mxu0 0.0
    %175 = vmatpush.msra.mxu0 0.0
    %176 = vmatpush.msra.mxu0 0.0
    %177 = vmatpush.msra.mxu0 %v149
    %178 = vmatpush.msra.mxu0 %v148
    %179 = vmatmul.f32.gmra.mxu0 %v152
    %v180 = vpop.f32.mrf.mxu0
    %v181 = vadd.f32 0.0, %v180
    %182 = vmatmul.f32.gmra.mxu0 %v155
    %v183 = vpop.f32.mrf.mxu0
    %v184 = vadd.f32 0.0, %v183
    %185 = vmatmul.f32.gmra.mxu0 %v158
    %v186 = vpop.f32.mrf.mxu0
    %v187 = vadd.f32 0.0, %v186
    %188 = vmatmul.f32.gmra.mxu0 %v161
    %v189 = vpop.f32.mrf.mxu0
    %v190 = vadd.f32 0.0, %v189
    %191 = vdwg.mxu0
    %v192 = vld [vmem:[%s3] sm:$0xff]
    %v193 = vld [vmem:[%s3 + $0x8] sm:$0xff]
    %vm194 = vcmask 261120
    %v196 = vsel %vm194, %v192, 0
    %v199 = vsel %vm194, %v193, 0
    %201 = vmatpush.msra.mxu0 0.0
    %202 = vmatpush.msra.mxu0 0.0
    %203 = vmatpush.msra.mxu0 0.0
    %204 = vmatpush.msra.mxu0 0.0
    %205 = vmatpush.msra.mxu0 0.0
    %206 = vmatpush.msra.mxu0 0.0
    %207 = vmatpush.msra.mxu0 0.0
    %208 = vmatpush.msra.mxu0 0.0
    %209 = vmatpush.msra.mxu0 0.0
    %210 = vmatpush.msra.mxu0 0.0
    %211 = vmatpush.msra.mxu0 0.0
    %212 = vmatpush.msra.mxu0 0.0
    %213 = vmatpush.msra.mxu0 %v190
    %214 = vmatpush.msra.mxu0 %v187
    %215 = vmatpush.msra.mxu0 %v184
    %216 = vmatpush.msra.mxu0 %v181
    %217 = vmatmul.f32.gmra.mxu0 %v196
    %v218 = vpop.f32.mrf.mxu0
    %v219 = vadd.f32 0.0, %v218
    %220 = vmatmul.f32.gmra.mxu0 %v199
    %v221 = vpop.f32.mrf.mxu0
    %v222 = vadd.f32 0.0, %v221
    %223 = vdwg.mxu0
    %v225 = vperm.slane %v147, 0
    %v227 = vadd.f32 %v225, %v219
    %v228 = vadd.f32 %v225, %v222
    %s229 = scalar_lea.vmem %s5, 16
    %v230 = vld [vmem:[%s229] sm:$0xff]
    %v231 = vld [vmem:[%s229 + $0x8] sm:$0xff]
    %232 = vmatpush.msra.mxu0 0.0
    %233 = vmatpush.msra.mxu0 0.0
    %234 = vmatpush.msra.mxu0 0.0
    %235 = vmatpush.msra.mxu0 0.0
    %236 = vmatpush.msra.mxu0 0.0
    %237 = vmatpush.msra.mxu0 0.0
    %238 = vmatpush.msra.mxu0 0.0
    %239 = vmatpush.msra.mxu0 0.0
    %240 = vmatpush.msra.mxu0 0.0
    %241 = vmatpush.msra.mxu0 0.0
    %242 = vmatpush.msra.mxu0 0.0
    %243 = vmatpush.msra.mxu0 0.0
    %244 = vmatpush.msra.mxu0 0.0
    %245 = vmatpush.msra.mxu0 0.0
    %246 = vmatpush.msra.mxu0 %v231
    %247 = vmatpush.msra.mxu0 %v230
    %248 = vmatmul.f32.gmra.mxu0 %v152
    %v249 = vpop.f32.mrf.mxu0
    %v250 = vadd.f32 0.0, %v249
    %251 = vmatmul.f32.gmra.mxu0 %v155
    %v252 = vpop.f32.mrf.mxu0
    %v253 = vadd.f32 0.0, %v252
    %254 = vmatmul.f32.gmra.mxu0 %v158
    %v255 = vpop.f32.mrf.mxu0
    %v256 = vadd.f32 0.0, %v255
    %257 = vmatmul.f32.gmra.mxu0 %v161
    %v258 = vpop.f32.mrf.mxu0
    %v259 = vadd.f32 0.0, %v258
    %260 = vdwg.mxu0
    %s261 = scalar_lea.vmem %s3, 16
    %v262 = vld [vmem:[%s261] sm:$0xff]
    %v263 = vld [vmem:[%s261 + $0x8] sm:$0xff]
    %v265 = vsel %vm194, %v262, 0
    %v268 = vsel %vm194, %v263, 0
    %270 = vmatpush.msra.mxu0 0.0
    %271 = vmatpush.msra.mxu0 0.0
    %272 = vmatpush.msra.mxu0 0.0
    %273 = vmatpush.msra.mxu0 0.0
    %274 = vmatpush.msra.mxu0 0.0
    %275 = vmatpush.msra.mxu0 0.0
    %276 = vmatpush.msra.mxu0 0.0
    %277 = vmatpush.msra.mxu0 0.0
    %278 = vmatpush.msra.mxu0 0.0
    %279 = vmatpush.msra.mxu0 0.0
    %280 = vmatpush.msra.mxu0 0.0
    %281 = vmatpush.msra.mxu0 0.0
    %282 = vmatpush.msra.mxu0 %v259
    %283 = vmatpush.msra.mxu0 %v256
    %284 = vmatpush.msra.mxu0 %v253
    %285 = vmatpush.msra.mxu0 %v250
    %286 = vmatmul.f32.gmra.mxu0 %v265
    %v287 = vpop.f32.mrf.mxu0
    %v288 = vadd.f32 0.0, %v287
    %289 = vmatmul.f32.gmra.mxu0 %v268
    %v290 = vpop.f32.mrf.mxu0
    %v291 = vadd.f32 0.0, %v290
    %292 = vdwg.mxu0
    %v293 = vadd.f32 %v227, %v288
    %v294 = vadd.f32 %v228, %v291
    %s295 = scalar_lea.vmem %s5, 32
    %v296 = vld [vmem:[%s295] sm:$0xff]
    %v297 = vld [vmem:[%s295 + $0x8] sm:$0xff]
    %298 = vmatpush.msra.mxu0 0.0
    %299 = vmatpush.msra.mxu0 0.0
    %300 = vmatpush.msra.mxu0 0.0
    %301 = vmatpush.msra.mxu0 0.0
    %302 = vmatpush.msra.mxu0 0.0
    %303 = vmatpush.msra.mxu0 0.0
    %304 = vmatpush.msra.mxu0 0.0
    %305 = vmatpush.msra.mxu0 0.0
    %306 = vmatpush.msra.mxu0 0.0
    %307 = vmatpush.msra.mxu0 0.0
    %308 = vmatpush.msra.mxu0 0.0
    %309 = vmatpush.msra.mxu0 0.0
    %310 = vmatpush.msra.mxu0 0.0
    %311 = vmatpush.msra.mxu0 0.0
    %312 = vmatpush.msra.mxu0 %v297
    %313 = vmatpush.msra.mxu0 %v296
    %314 = vmatmul.f32.gmra.mxu0 %v152
    %v315 = vpop.f32.mrf.mxu0
    %v316 = vadd.f32 0.0, %v315
    %317 = vmatmul.f32.gmra.mxu0 %v155
    %v318 = vpop.f32.mrf.mxu0
    %v319 = vadd.f32 0.0, %v318
    %320 = vmatmul.f32.gmra.mxu0 %v158
    %v321 = vpop.f32.mrf.mxu0
    %v322 = vadd.f32 0.0, %v321
    %323 = vmatmul.f32.gmra.mxu0 %v161
    %v324 = vpop.f32.mrf.mxu0
    %v325 = vadd.f32 0.0, %v324
    %326 = vdwg.mxu0
    %s327 = scalar_lea.vmem %s3, 32
    %v328 = vld [vmem:[%s327] sm:$0xff]
    %v329 = vld [vmem:[%s327 + $0x8] sm:$0xff]
    %v331 = vsel %vm194, %v328, 0
    %v334 = vsel %vm194, %v329, 0
    %336 = vmatpush.msra.mxu0 0.0
    %337 = vmatpush.msra.mxu0 0.0
    %338 = vmatpush.msra.mxu0 0.0
    %339 = vmatpush.msra.mxu0 0.0
    %340 = vmatpush.msra.mxu0 0.0
    %341 = vmatpush.msra.mxu0 0.0
    %342 = vmatpush.msra.mxu0 0.0
    %343 = vmatpush.msra.mxu0 0.0
    %344 = vmatpush.msra.mxu0 0.0
    %345 = vmatpush.msra.mxu0 0.0
    %346 = vmatpush.msra.mxu0 0.0
    %347 = vmatpush.msra.mxu0 0.0
    %348 = vmatpush.msra.mxu0 %v325
    %349 = vmatpush.msra.mxu0 %v322
    %350 = vmatpush.msra.mxu0 %v319
    %351 = vmatpush.msra.mxu0 %v316
    %352 = vmatmul.f32.gmra.mxu0 %v331
    %v353 = vpop.f32.mrf.mxu0
    %v354 = vadd.f32 0.0, %v353
    %355 = vmatmul.f32.gmra.mxu0 %v334
    %v356 = vpop.f32.mrf.mxu0
    %v357 = vadd.f32 0.0, %v356
    %358 = vdwg.mxu0
    %v359 = vadd.f32 %v293, %v354
    %v360 = vadd.f32 %v294, %v357
    %v361 = vsel %vm194, %v359, 0.0
    %v362 = vsel %vm194, %v360, 0.0
    %v363 = vadd.f32 %v361, %v362
    %v364 = vrot.slane %v363, 4
    %v365 = vadd.f32 %v363, %v364
    %v366 = vrot.slane %v365, 2
    %v367 = vadd.f32 %v365, %v366
    %v368 = vrot.slane %v367, 1
    %v369 = vadd.f32 %v367, %v368
    %v370 = vrcp.pop 16.0
    %v371 = vmul.f32 16.0, %v370
    %v372 = vsub.f32 1.0, %v371
    %v373 = vmul.f32 %v370, %v372
    %v374 = vadd.f32 %v370, %v373
    %vm375 = vweird.f32 %v370
    %v376 = vsel %vm375, %v370, %v374
    %v377 = vmul.f32 %v369, %v376
    %v378 = vmul.f32 %v359, %v359
    %v379 = vmul.f32 %v360, %v360
    %v380 = vsel %vm194, %v378, 0.0
    %v381 = vsel %vm194, %v379, 0.0
    %v382 = vadd.f32 %v380, %v381
    %v383 = vrot.slane %v382, 4
    %v384 = vadd.f32 %v382, %v383
    %v385 = vrot.slane %v384, 2
    %v386 = vadd.f32 %v384, %v385
    %v387 = vrot.slane %v386, 1
    %v388 = vadd.f32 %v386, %v387
    %v389 = vmul.f32 %v388, %v376
    %v390 = vld [vmem:[%s9] sm:$0xff]
    %v391 = vld [vmem:[%s9 + $0x8] sm:$0xff]
    %v392 = vld [vmem:[%s9 + $0x10] sm:$0xff]
    %v393 = vld [vmem:[%s9 + $0x18] sm:$0xff]
    %v395 = vsel %vm194, %v377, 0
    %397 = vmatpush.msra.mxu0 0.0
    %398 = vmatpush.msra.mxu0 0.0
    %399 = vmatpush.msra.mxu0 0.0
    %400 = vmatpush.msra.mxu0 0.0
    %401 = vmatpush.msra.mxu0 0.0
    %402 = vmatpush.msra.mxu0 0.0
    %403 = vmatpush.msra.mxu0 0.0
    %404 = vmatpush.msra.mxu0 0.0
    %405 = vmatpush.msra.mxu0 0.0
    %406 = vmatpush.msra.mxu0 0.0
    %407 = vmatpush.msra.mxu0 0.0
    %408 = vmatpush.msra.mxu0 0.0
    %409 = vmatpush.msra.mxu0 %v393
    %410 = vmatpush.msra.mxu0 %v392
    %411 = vmatpush.msra.mxu0 %v391
    %412 = vmatpush.msra.mxu0 %v390
    %413 = vmatmul.f32.gmra.mxu0 %v395
    %v414 = vpop.f32.mrf.mxu0
    %v415 = vadd.f32 0.0, %v414
    %416 = vdwg.mxu0
    %v418 = vsel %vm194, %v389, 0
    %420 = vmatpush.msra.mxu0 0.0
    %421 = vmatpush.msra.mxu0 0.0
    %422 = vmatpush.msra.mxu0 0.0
    %423 = vmatpush.msra.mxu0 0.0
    %424 = vmatpush.msra.mxu0 0.0
    %425 = vmatpush.msra.mxu0 0.0
    %426 = vmatpush.msra.mxu0 0.0
    %427 = vmatpush.msra.mxu0 0.0
    %428 = vmatpush.msra.mxu0 0.0
    %429 = vmatpush.msra.mxu0 0.0
    %430 = vmatpush.msra.mxu0 0.0
    %431 = vmatpush.msra.mxu0 0.0
    %432 = vmatpush.msra.mxu0 %v393
    %433 = vmatpush.msra.mxu0 %v392
    %434 = vmatpush.msra.mxu0 %v391
    %435 = vmatpush.msra.mxu0 %v390
    %436 = vmatmul.f32.gmra.mxu0 %v418
    %v437 = vpop.f32.mrf.mxu0
    %v438 = vadd.f32 0.0, %v437
    %439 = vdwg.mxu0
    %v440 = vmul.f32 %v415, %v415
    %v441 = vsub.f32 %v438, %v440
    %v442 = vmax.f32 %v441, 0.0
    %v443 = vadd.f32 %v442, 1e-05
    %v444 = vrsqrt.pop %v443
    %v445 = vmul.f32 %v444, %v443
    %v446 = vmul.f32 %v445, %v444
    %v447 = vmul.f32 0.5, %v446
    %v448 = vsub.f32 1.5, %v447
    %v449 = vmul.f32 %v444, %v448
    %vm450 = vweird.f32 %v443
    %vm451 = vweird.f32 %v444
    %vm452 = vmor %vm450, %vm451
    %v453 = vsel %vm452, %v444, %v449
    %v454 = vld [vmem:[%s11] sm:$0xf]
    %vm455 = vcmask 31744
    %v457 = vsel %vm455, %v453, 0
    %vm459 = vcmask 1043456
    %v461 = vsel %vm459, %v454, 0
    %463 = vmatpush.msra.mxu0 0.0
    %464 = vmatpush.msra.mxu0 0.0
    %465 = vmatpush.msra.mxu0 0.0
    %466 = vmatpush.msra.mxu0 0.0
    %467 = vmatpush.msra.mxu0 0.0
    %468 = vmatpush.msra.mxu0 0.0
    %469 = vmatpush.msra.mxu0 0.0
    %470 = vmatpush.msra.mxu0 0.0
    %471 = vmatpush.msra.mxu0 0.0
    %472 = vmatpush.msra.mxu0 0.0
    %473 = vmatpush.msra.mxu0 0.0
    %474 = vmatpush.msra.mxu0 0.0
    %475 = vmatpush.msra.mxu0 0.0
    %476 = vmatpush.msra.mxu0 0.0
    %477 = vmatpush.msra.mxu0 0.0
    %478 = vmatpush.msra.mxu0 %v461
    %479 = vmatmul.f32.gmra.mxu0 %v457
    %v480 = vpop.f32.mrf.mxu0
    %v481 = vadd.f32 0.0, %v480
    %482 = vdwg.mxu0
    %v483 = vld [vmem:[%s13] sm:$0x1]
    %v484 = vmul.f32 %v415, %v453
    %v486 = vsel %vm455, %v484, 0
    %488 = vmatpush.msra.mxu0 0.0
    %489 = vmatpush.msra.mxu0 0.0
    %490 = vmatpush.msra.mxu0 0.0
    %491 = vmatpush.msra.mxu0 0.0
    %492 = vmatpush.msra.mxu0 0.0
    %493 = vmatpush.msra.mxu0 0.0
    %494 = vmatpush.msra.mxu0 0.0
    %495 = vmatpush.msra.mxu0 0.0
    %496 = vmatpush.msra.mxu0 0.0
    %497 = vmatpush.msra.mxu0 0.0
    %498 = vmatpush.msra.mxu0 0.0
    %499 = vmatpush.msra.mxu0 0.0
    %500 = vmatpush.msra.mxu0 0.0
    %501 = vmatpush.msra.mxu0 0.0
    %502 = vmatpush.msra.mxu0 0.0
    %503 = vmatpush.msra.mxu0 %v461
    %504 = vmatmul.f32.gmra.mxu0 %v486
    %v505 = vpop.f32.mrf.mxu0
    %v506 = vadd.f32 0.0, %v505
    %507 = vdwg.mxu0
    %v508 = vsub.f32 %v483, %v506
    %v509 = vperm.slane %v481, 0
    %v510 = vmul.f32 %v359, %v509
    %v511 = vmul.f32 %v360, %v509
    %v513 = vperm.slane %v508, 0
    %v515 = vadd.f32 %v510, %v513
    %v516 = vadd.f32 %v511, %v513
    %v517 = vmax.f32 %v515, 0.0
    %v518 = vmax.f32 %v516, 0.0
    %v519 = vld [vmem:[%s19] sm:$0x1]
    %v520 = vld [vmem:[%s17] sm:$0xff]
    %v521 = vld [vmem:[%s17 + $0x8] sm:$0xff]
    %v522 = vld [vmem:[%s17 + $0x10] sm:$0xff]
    %v523 = vld [vmem:[%s17 + $0x18] sm:$0xff]
    %v525 = vsel %vm194, %v517, 0
    %v528 = vsel %vm194, %v518, 0
    %530 = vmatpush.msra.mxu0 0.0
    %531 = vmatpush.msra.mxu0 0.0
    %532 = vmatpush.msra.mxu0 0.0
    %533 = vmatpush.msra.mxu0 0.0
    %534 = vmatpush.msra.mxu0 0.0
    %535 = vmatpush.msra.mxu0 0.0
    %536 = vmatpush.msra.mxu0 0.0
    %537 = vmatpush.msra.mxu0 0.0
    %538 = vmatpush.msra.mxu0 0.0
    %539 = vmatpush.msra.mxu0 0.0
    %540 = vmatpush.msra.mxu0 0.0
    %541 = vmatpush.msra.mxu0 0.0
    %542 = vmatpush.msra.mxu0 %v523
    %543 = vmatpush.msra.mxu0 %v522
    %544 = vmatpush.msra.mxu0 %v521
    %545 = vmatpush.msra.mxu0 %v520
    %546 = vmatmul.f32.gmra.mxu0 %v525
    %v547 = vpop.f32.mrf.mxu0
    %v548 = vadd.f32 0.0, %v547
    %549 = vmatmul.f32.gmra.mxu0 %v528
    %v550 = vpop.f32.mrf.mxu0
    %v551 = vadd.f32 0.0, %v550
    %552 = vdwg.mxu0
    %v553 = vld [vmem:[%s15] sm:$0xff]
    %v555 = vsel %vm150, %v553, 0
    %557 = vmatpush.msra.mxu0 0.0
    %558 = vmatpush.msra.mxu0 0.0
    %559 = vmatpush.msra.mxu0 0.0
    %560 = vmatpush.msra.mxu0 0.0
    %561 = vmatpush.msra.mxu0 0.0
    %562 = vmatpush.msra.mxu0 0.0
    %563 = vmatpush.msra.mxu0 0.0
    %564 = vmatpush.msra.mxu0 0.0
    %565 = vmatpush.msra.mxu0 0.0
    %566 = vmatpush.msra.mxu0 0.0
    %567 = vmatpush.msra.mxu0 0.0
    %568 = vmatpush.msra.mxu0 0.0
    %569 = vmatpush.msra.mxu0 0.0
    %570 = vmatpush.msra.mxu0 0.0
    %571 = vmatpush.msra.mxu0 %v551
    %572 = vmatpush.msra.mxu0 %v548
    %573 = vmatmul.f32.gmra.mxu0 %v555
    %v574 = vpop.f32.mrf.mxu0
    %v575 = vadd.f32 0.0, %v574
    %576 = vdwg.mxu0
    %v578 = vperm.slane %v519, 0
    %v580 = vadd.f32 %v578, %v575
    %s581 = scalar_lea.vmem %s17, 32
    %v582 = vld [vmem:[%s581] sm:$0xff]
    %v583 = vld [vmem:[%s581 + $0x8] sm:$0xff]
    %v584 = vld [vmem:[%s581 + $0x10] sm:$0xff]
    %v585 = vld [vmem:[%s581 + $0x18] sm:$0xff]
    %586 = vmatpush.msra.mxu0 0.0
    %587 = vmatpush.msra.mxu0 0.0
    %588 = vmatpush.msra.mxu0 0.0
    %589 = vmatpush.msra.mxu0 0.0
    %590 = vmatpush.msra.mxu0 0.0
    %591 = vmatpush.msra.mxu0 0.0
    %592 = vmatpush.msra.mxu0 0.0
    %593 = vmatpush.msra.mxu0 0.0
    %594 = vmatpush.msra.mxu0 0.0
    %595 = vmatpush.msra.mxu0 0.0
    %596 = vmatpush.msra.mxu0 0.0
    %597 = vmatpush.msra.mxu0 0.0
    %598 = vmatpush.msra.mxu0 %v585
    %599 = vmatpush.msra.mxu0 %v584
    %600 = vmatpush.msra.mxu0 %v583
    %601 = vmatpush.msra.mxu0 %v582
    %602 = vmatmul.f32.gmra.mxu0 %v525
    %v603 = vpop.f32.mrf.mxu0
    %v604 = vadd.f32 0.0, %v603
    %605 = vmatmul.f32.gmra.mxu0 %v528
    %v606 = vpop.f32.mrf.mxu0
    %v607 = vadd.f32 0.0, %v606
    %608 = vdwg.mxu0
    %s609 = scalar_lea.vmem %s15, 8
    %v610 = vld [vmem:[%s609] sm:$0xff]
    %v612 = vsel %vm150, %v610, 0
    %614 = vmatpush.msra.mxu0 0.0
    %615 = vmatpush.msra.mxu0 0.0
    %616 = vmatpush.msra.mxu0 0.0
    %617 = vmatpush.msra.mxu0 0.0
    %618 = vmatpush.msra.mxu0 0.0
    %619 = vmatpush.msra.mxu0 0.0
    %620 = vmatpush.msra.mxu0 0.0
    %621 = vmatpush.msra.mxu0 0.0
    %622 = vmatpush.msra.mxu0 0.0
    %623 = vmatpush.msra.mxu0 0.0
    %624 = vmatpush.msra.mxu0 0.0
    %625 = vmatpush.msra.mxu0 0.0
    %626 = vmatpush.msra.mxu0 0.0
    %627 = vmatpush.msra.mxu0 0.0
    %628 = vmatpush.msra.mxu0 %v607
    %629 = vmatpush.msra.mxu0 %v604
    %630 = vmatmul.f32.gmra.mxu0 %v612
    %v631 = vpop.f32.mrf.mxu0
    %v632 = vadd.f32 0.0, %v631
    %633 = vdwg.mxu0
    %v634 = vadd.f32 %v580, %v632
    %s635 = scalar_lea.vmem %s17, 64
    %v636 = vld [vmem:[%s635] sm:$0xff]
    %v637 = vld [vmem:[%s635 + $0x8] sm:$0xff]
    %v638 = vld [vmem:[%s635 + $0x10] sm:$0xff]
    %v639 = vld [vmem:[%s635 + $0x18] sm:$0xff]
    %640 = vmatpush.msra.mxu0 0.0
    %641 = vmatpush.msra.mxu0 0.0
    %642 = vmatpush.msra.mxu0 0.0
    %643 = vmatpush.msra.mxu0 0.0
    %644 = vmatpush.msra.mxu0 0.0
    %645 = vmatpush.msra.mxu0 0.0
    %646 = vmatpush.msra.mxu0 0.0
    %647 = vmatpush.msra.mxu0 0.0
    %648 = vmatpush.msra.mxu0 0.0
    %649 = vmatpush.msra.mxu0 0.0
    %650 = vmatpush.msra.mxu0 0.0
    %651 = vmatpush.msra.mxu0 0.0
    %652 = vmatpush.msra.mxu0 %v639
    %653 = vmatpush.msra.mxu0 %v638
    %654 = vmatpush.msra.mxu0 %v637
    %655 = vmatpush.msra.mxu0 %v636
    %656 = vmatmul.f32.gmra.mxu0 %v525
    %v657 = vpop.f32.mrf.mxu0
    %v658 = vadd.f32 0.0, %v657
    %659 = vmatmul.f32.gmra.mxu0 %v528
    %v660 = vpop.f32.mrf.mxu0
    %v661 = vadd.f32 0.0, %v660
    %662 = vdwg.mxu0
    %s663 = scalar_lea.vmem %s15, 16
    %v664 = vld [vmem:[%s663] sm:$0xff]
    %v666 = vsel %vm150, %v664, 0
    %668 = vmatpush.msra.mxu0 0.0
    %669 = vmatpush.msra.mxu0 0.0
    %670 = vmatpush.msra.mxu0 0.0
    %671 = vmatpush.msra.mxu0 0.0
    %672 = vmatpush.msra.mxu0 0.0
    %673 = vmatpush.msra.mxu0 0.0
    %674 = vmatpush.msra.mxu0 0.0
    %675 = vmatpush.msra.mxu0 0.0
    %676 = vmatpush.msra.mxu0 0.0
    %677 = vmatpush.msra.mxu0 0.0
    %678 = vmatpush.msra.mxu0 0.0
    %679 = vmatpush.msra.mxu0 0.0
    %680 = vmatpush.msra.mxu0 0.0
    %681 = vmatpush.msra.mxu0 0.0
    %682 = vmatpush.msra.mxu0 %v661
    %683 = vmatpush.msra.mxu0 %v658
    %684 = vmatmul.f32.gmra.mxu0 %v666
    %v685 = vpop.f32.mrf.mxu0
    %v686 = vadd.f32 0.0, %v685
    %687 = vdwg.mxu0
    %v688 = vadd.f32 %v634, %v686
    %v689 = vsel %vm194, %v688, 0.0
    %v690 = vrot.slane %v689, 4
    %v691 = vadd.f32 %v689, %v690
    %v692 = vrot.slane %v691, 2
    %v693 = vadd.f32 %v691, %v692
    %v694 = vrot.slane %v693, 1
    %v695 = vadd.f32 %v693, %v694
    %v696 = vrcp.pop 8.0
    %v697 = vmul.f32 8.0, %v696
    %v698 = vsub.f32 1.0, %v697
    %v699 = vmul.f32 %v696, %v698
    %v700 = vadd.f32 %v696, %v699
    %vm701 = vweird.f32 %v696
    %v702 = vsel %vm701, %v696, %v700
    %v703 = vmul.f32 %v695, %v702
    %v704 = vmul.f32 %v688, %v688
    %v705 = vsel %vm194, %v704, 0.0
    %v706 = vrot.slane %v705, 4
    %v707 = vadd.f32 %v705, %v706
    %v708 = vrot.slane %v707, 2
    %v709 = vadd.f32 %v707, %v708
    %v710 = vrot.slane %v709, 1
    %v711 = vadd.f32 %v709, %v710
    %v712 = vmul.f32 %v711, %v702
    %v713 = vld [vmem:[%s21] sm:$0xff]
    %v714 = vld [vmem:[%s21 + $0x8] sm:$0xff]
    %v715 = vld [vmem:[%s21 + $0x10] sm:$0xff]
    %v716 = vld [vmem:[%s21 + $0x18] sm:$0xff]
    %v718 = vsel %vm194, %v703, 0
    %720 = vmatpush.msra.mxu0 0.0
    %721 = vmatpush.msra.mxu0 0.0
    %722 = vmatpush.msra.mxu0 0.0
    %723 = vmatpush.msra.mxu0 0.0
    %724 = vmatpush.msra.mxu0 0.0
    %725 = vmatpush.msra.mxu0 0.0
    %726 = vmatpush.msra.mxu0 0.0
    %727 = vmatpush.msra.mxu0 0.0
    %728 = vmatpush.msra.mxu0 0.0
    %729 = vmatpush.msra.mxu0 0.0
    %730 = vmatpush.msra.mxu0 0.0
    %731 = vmatpush.msra.mxu0 0.0
    %732 = vmatpush.msra.mxu0 %v716
    %733 = vmatpush.msra.mxu0 %v715
    %734 = vmatpush.msra.mxu0 %v714
    %735 = vmatpush.msra.mxu0 %v713
    %736 = vmatmul.f32.gmra.mxu0 %v718
    %v737 = vpop.f32.mrf.mxu0
    %v738 = vadd.f32 0.0, %v737
    %739 = vdwg.mxu0
    %v741 = vsel %vm194, %v712, 0
    %743 = vmatpush.msra.mxu0 0.0
    %744 = vmatpush.msra.mxu0 0.0
    %745 = vmatpush.msra.mxu0 0.0
    %746 = vmatpush.msra.mxu0 0.0
    %747 = vmatpush.msra.mxu0 0.0
    %748 = vmatpush.msra.mxu0 0.0
    %749 = vmatpush.msra.mxu0 0.0
    %750 = vmatpush.msra.mxu0 0.0
    %751 = vmatpush.msra.mxu0 0.0
    %752 = vmatpush.msra.mxu0 0.0
    %753 = vmatpush.msra.mxu0 0.0
    %754 = vmatpush.msra.mxu0 0.0
    %755 = vmatpush.msra.mxu0 %v716
    %756 = vmatpush.msra.mxu0 %v715
    %757 = vmatpush.msra.mxu0 %v714
    %758 = vmatpush.msra.mxu0 %v713
    %759 = vmatmul.f32.gmra.mxu0 %v741
    %v760 = vpop.f32.mrf.mxu0
    %v761 = vadd.f32 0.0, %v760
    %762 = vdwg.mxu0
    %v763 = vmul.f32 %v738, %v738
    %v764 = vsub.f32 %v761, %v763
    %v765 = vmax.f32 %v764, 0.0
    %v766 = vadd.f32 %v765, 1e-05
    %v767 = vrsqrt.pop %v766
    %v768 = vmul.f32 %v767, %v766
    %v769 = vmul.f32 %v768, %v767
    %v770 = vmul.f32 0.5, %v769
    %v771 = vsub.f32 1.5, %v770
    %v772 = vmul.f32 %v767, %v771
    %vm773 = vweird.f32 %v766
    %vm774 = vweird.f32 %v767
    %vm775 = vmor %vm773, %vm774
    %v776 = vsel %vm775, %v767, %v772
    %v777 = vld [vmem:[%s23] sm:$0xff]
    %vm778 = vcmask 64512
    %v780 = vsel %vm778, %v776, 0
    %782 = vmatpush.msra.mxu0 0.0
    %783 = vmatpush.msra.mxu0 0.0
    %784 = vmatpush.msra.mxu0 0.0
    %785 = vmatpush.msra.mxu0 0.0
    %786 = vmatpush.msra.mxu0 0.0
    %787 = vmatpush.msra.mxu0 0.0
    %788 = vmatpush.msra.mxu0 0.0
    %789 = vmatpush.msra.mxu0 0.0
    %790 = vmatpush.msra.mxu0 0.0
    %791 = vmatpush.msra.mxu0 0.0
    %792 = vmatpush.msra.mxu0 0.0
    %793 = vmatpush.msra.mxu0 0.0
    %794 = vmatpush.msra.mxu0 0.0
    %795 = vmatpush.msra.mxu0 0.0
    %796 = vmatpush.msra.mxu0 0.0
    %797 = vmatpush.msra.mxu0 %v777
    %798 = vmatmul.f32.gmra.mxu0 %v780
    %v799 = vpop.f32.mrf.mxu0
    %v800 = vadd.f32 0.0, %v799
    %801 = vdwg.mxu0
    %v802 = vld [vmem:[%s25] sm:$0x1]
    %v803 = vmul.f32 %v738, %v776
    %v805 = vsel %vm778, %v803, 0
    %807 = vmatpush.msra.mxu0 0.0
    %808 = vmatpush.msra.mxu0 0.0
    %809 = vmatpush.msra.mxu0 0.0
    %810 = vmatpush.msra.mxu0 0.0
    %811 = vmatpush.msra.mxu0 0.0
    %812 = vmatpush.msra.mxu0 0.0
    %813 = vmatpush.msra.mxu0 0.0
    %814 = vmatpush.msra.mxu0 0.0
    %815 = vmatpush.msra.mxu0 0.0
    %816 = vmatpush.msra.mxu0 0.0
    %817 = vmatpush.msra.mxu0 0.0
    %818 = vmatpush.msra.mxu0 0.0
    %819 = vmatpush.msra.mxu0 0.0
    %820 = vmatpush.msra.mxu0 0.0
    %821 = vmatpush.msra.mxu0 0.0
    %822 = vmatpush.msra.mxu0 %v777
    %823 = vmatmul.f32.gmra.mxu0 %v805
    %v824 = vpop.f32.mrf.mxu0
    %v825 = vadd.f32 0.0, %v824
    %826 = vdwg.mxu0
    %v827 = vsub.f32 %v802, %v825
    %v828 = vperm.slane %v800, 0
    %v829 = vmul.f32 %v688, %v828
    %v831 = vperm.slane %v827, 0
    %v833 = vadd.f32 %v829, %v831
    %v834 = vmax.f32 %v833, 0.0
    %v835 = vld [vmem:[%s31] sm:$0x1]
    %v836 = vld [vmem:[%s29] sm:$0xff]
    %v837 = vld [vmem:[%s29 + $0x8] sm:$0xff]
    %v838 = vld [vmem:[%s29 + $0x10] sm:$0xff]
    %v839 = vld [vmem:[%s29 + $0x18] sm:$0xff]
    %v841 = vsel %vm194, %v834, 0
    %843 = vmatpush.msra.mxu0 0.0
    %844 = vmatpush.msra.mxu0 0.0
    %845 = vmatpush.msra.mxu0 0.0
    %846 = vmatpush.msra.mxu0 0.0
    %847 = vmatpush.msra.mxu0 0.0
    %848 = vmatpush.msra.mxu0 0.0
    %849 = vmatpush.msra.mxu0 0.0
    %850 = vmatpush.msra.mxu0 0.0
    %851 = vmatpush.msra.mxu0 0.0
    %852 = vmatpush.msra.mxu0 0.0
    %853 = vmatpush.msra.mxu0 0.0
    %854 = vmatpush.msra.mxu0 0.0
    %855 = vmatpush.msra.mxu0 %v839
    %856 = vmatpush.msra.mxu0 %v838
    %857 = vmatpush.msra.mxu0 %v837
    %858 = vmatpush.msra.mxu0 %v836
    %859 = vmatmul.f32.gmra.mxu0 %v841
    %v860 = vpop.f32.mrf.mxu0
    %v861 = vadd.f32 0.0, %v860
    %862 = vdwg.mxu0
    %v863 = vld [vmem:[%s27] sm:$0xf]
    %v865 = vsel %vm778, %v863, 0
    %867 = vmatpush.msra.mxu0 0.0
    %868 = vmatpush.msra.mxu0 0.0
    %869 = vmatpush.msra.mxu0 0.0
    %870 = vmatpush.msra.mxu0 0.0
    %871 = vmatpush.msra.mxu0 0.0
    %872 = vmatpush.msra.mxu0 0.0
    %873 = vmatpush.msra.mxu0 0.0
    %874 = vmatpush.msra.mxu0 0.0
    %875 = vmatpush.msra.mxu0 0.0
    %876 = vmatpush.msra.mxu0 0.0
    %877 = vmatpush.msra.mxu0 0.0
    %878 = vmatpush.msra.mxu0 0.0
    %879 = vmatpush.msra.mxu0 0.0
    %880 = vmatpush.msra.mxu0 0.0
    %881 = vmatpush.msra.mxu0 0.0
    %882 = vmatpush.msra.mxu0 %v861
    %883 = vmatmul.f32.gmra.mxu0 %v865
    %v884 = vpop.f32.mrf.mxu0
    %v885 = vadd.f32 0.0, %v884
    %886 = vdwg.mxu0
    %v888 = vperm.slane %v835, 0
    %v890 = vadd.f32 %v888, %v885
    %s891 = scalar_lea.vmem %s29, 32
    %v892 = vld [vmem:[%s891] sm:$0xff]
    %v893 = vld [vmem:[%s891 + $0x8] sm:$0xff]
    %v894 = vld [vmem:[%s891 + $0x10] sm:$0xff]
    %v895 = vld [vmem:[%s891 + $0x18] sm:$0xff]
    %896 = vmatpush.msra.mxu0 0.0
    %897 = vmatpush.msra.mxu0 0.0
    %898 = vmatpush.msra.mxu0 0.0
    %899 = vmatpush.msra.mxu0 0.0
    %900 = vmatpush.msra.mxu0 0.0
    %901 = vmatpush.msra.mxu0 0.0
    %902 = vmatpush.msra.mxu0 0.0
    %903 = vmatpush.msra.mxu0 0.0
    %904 = vmatpush.msra.mxu0 0.0
    %905 = vmatpush.msra.mxu0 0.0
    %906 = vmatpush.msra.mxu0 0.0
    %907 = vmatpush.msra.mxu0 0.0
    %908 = vmatpush.msra.mxu0 %v895
    %909 = vmatpush.msra.mxu0 %v894
    %910 = vmatpush.msra.mxu0 %v893
    %911 = vmatpush.msra.mxu0 %v892
    %912 = vmatmul.f32.gmra.mxu0 %v841
    %v913 = vpop.f32.mrf.mxu0
    %v914 = vadd.f32 0.0, %v913
    %915 = vdwg.mxu0
    %s916 = scalar_lea.vmem %s27, 4
    %v917 = vld [vmem:[%s916] sm:$0xf]
    %v919 = vsel %vm778, %v917, 0
    %921 = vmatpush.msra.mxu0 0.0
    %922 = vmatpush.msra.mxu0 0.0
    %923 = vmatpush.msra.mxu0 0.0
    %924 = vmatpush.msra.mxu0 0.0
    %925 = vmatpush.msra.mxu0 0.0
    %926 = vmatpush.msra.mxu0 0.0
    %927 = vmatpush.msra.mxu0 0.0
    %928 = vmatpush.msra.mxu0 0.0
    %929 = vmatpush.msra.mxu0 0.0
    %930 = vmatpush.msra.mxu0 0.0
    %931 = vmatpush.msra.mxu0 0.0
    %932 = vmatpush.msra.mxu0 0.0
    %933 = vmatpush.msra.mxu0 0.0
    %934 = vmatpush.msra.mxu0 0.0
    %935 = vmatpush.msra.mxu0 0.0
    %936 = vmatpush.msra.mxu0 %v914
    %937 = vmatmul.f32.gmra.mxu0 %v919
    %v938 = vpop.f32.mrf.mxu0
    %v939 = vadd.f32 0.0, %v938
    %940 = vdwg.mxu0
    %v941 = vadd.f32 %v890, %v939
    %s942 = scalar_lea.vmem %s29, 64
    %v943 = vld [vmem:[%s942] sm:$0xff]
    %v944 = vld [vmem:[%s942 + $0x8] sm:$0xff]
    %v945 = vld [vmem:[%s942 + $0x10] sm:$0xff]
    %v946 = vld [vmem:[%s942 + $0x18] sm:$0xff]
    %947 = vmatpush.msra.mxu0 0.0
    %948 = vmatpush.msra.mxu0 0.0
    %949 = vmatpush.msra.mxu0 0.0
    %950 = vmatpush.msra.mxu0 0.0
    %951 = vmatpush.msra.mxu0 0.0
    %952 = vmatpush.msra.mxu0 0.0
    %953 = vmatpush.msra.mxu0 0.0
    %954 = vmatpush.msra.mxu0 0.0
    %955 = vmatpush.msra.mxu0 0.0
    %956 = vmatpush.msra.mxu0 0.0
    %957 = vmatpush.msra.mxu0 0.0
    %958 = vmatpush.msra.mxu0 0.0
    %959 = vmatpush.msra.mxu0 %v946
    %960 = vmatpush.msra.mxu0 %v945
    %961 = vmatpush.msra.mxu0 %v944
    %962 = vmatpush.msra.mxu0 %v943
    %963 = vmatmul.f32.gmra.mxu0 %v841
    %v964 = vpop.f32.mrf.mxu0
    %v965 = vadd.f32 0.0, %v964
    %966 = vdwg.mxu0
    %s967 = scalar_lea.vmem %s27, 8
    %v968 = vld [vmem:[%s967] sm:$0xf]
    %v970 = vsel %vm778, %v968, 0
    %972 = vmatpush.msra.mxu0 0.0
    %973 = vmatpush.msra.mxu0 0.0
    %974 = vmatpush.msra.mxu0 0.0
    %975 = vmatpush.msra.mxu0 0.0
    %976 = vmatpush.msra.mxu0 0.0
    %977 = vmatpush.msra.mxu0 0.0
    %978 = vmatpush.msra.mxu0 0.0
    %979 = vmatpush.msra.mxu0 0.0
    %980 = vmatpush.msra.mxu0 0.0
    %981 = vmatpush.msra.mxu0 0.0
    %982 = vmatpush.msra.mxu0 0.0
    %983 = vmatpush.msra.mxu0 0.0
    %984 = vmatpush.msra.mxu0 0.0
    %985 = vmatpush.msra.mxu0 0.0
    %986 = vmatpush.msra.mxu0 0.0
    %987 = vmatpush.msra.mxu0 %v965
    %988 = vmatmul.f32.gmra.mxu0 %v970
    %v989 = vpop.f32.mrf.mxu0
    %v990 = vadd.f32 0.0, %v989
    %991 = vdwg.mxu0
    %v992 = vadd.f32 %v941, %v990
    %vm993 = vcmask 257024
    %v994 = vsel %vm993, %v992, 0.0
    %v995 = vrot.slane %v994, 4
    %v996 = vadd.f32 %v994, %v995
    %v997 = vrot.slane %v996, 2
    %v998 = vadd.f32 %v996, %v997
    %v999 = vrot.slane %v998, 1
    %v1000 = vadd.f32 %v998, %v999
    %v1001 = vrcp.pop 4.0
    %v1002 = vmul.f32 4.0, %v1001
    %v1003 = vsub.f32 1.0, %v1002
    %v1004 = vmul.f32 %v1001, %v1003
    %v1005 = vadd.f32 %v1001, %v1004
    %vm1006 = vweird.f32 %v1001
    %v1007 = vsel %vm1006, %v1001, %v1005
    %v1008 = vmul.f32 %v1000, %v1007
    %v1009 = vmul.f32 %v992, %v992
    %v1010 = vsel %vm993, %v1009, 0.0
    %v1011 = vrot.slane %v1010, 4
    %v1012 = vadd.f32 %v1010, %v1011
    %v1013 = vrot.slane %v1012, 2
    %v1014 = vadd.f32 %v1012, %v1013
    %v1015 = vrot.slane %v1014, 1
    %v1016 = vadd.f32 %v1014, %v1015
    %v1017 = vmul.f32 %v1016, %v1007
    %v1018 = vld [vmem:[%s33] sm:$0xff]
    %v1019 = vld [vmem:[%s33 + $0x8] sm:$0xff]
    %v1020 = vld [vmem:[%s33 + $0x10] sm:$0xff]
    %v1021 = vld [vmem:[%s33 + $0x18] sm:$0xff]
    %v1023 = vsel %vm194, %v1008, 0
    %1025 = vmatpush.msra.mxu0 0.0
    %1026 = vmatpush.msra.mxu0 0.0
    %1027 = vmatpush.msra.mxu0 0.0
    %1028 = vmatpush.msra.mxu0 0.0
    %1029 = vmatpush.msra.mxu0 0.0
    %1030 = vmatpush.msra.mxu0 0.0
    %1031 = vmatpush.msra.mxu0 0.0
    %1032 = vmatpush.msra.mxu0 0.0
    %1033 = vmatpush.msra.mxu0 0.0
    %1034 = vmatpush.msra.mxu0 0.0
    %1035 = vmatpush.msra.mxu0 0.0
    %1036 = vmatpush.msra.mxu0 0.0
    %1037 = vmatpush.msra.mxu0 %v1021
    %1038 = vmatpush.msra.mxu0 %v1020
    %1039 = vmatpush.msra.mxu0 %v1019
    %1040 = vmatpush.msra.mxu0 %v1018
    %1041 = vmatmul.f32.gmra.mxu0 %v1023
    %v1042 = vpop.f32.mrf.mxu0
    %v1043 = vadd.f32 0.0, %v1042
    %1044 = vdwg.mxu0
    %v1046 = vsel %vm194, %v1017, 0
    %1048 = vmatpush.msra.mxu0 0.0
    %1049 = vmatpush.msra.mxu0 0.0
    %1050 = vmatpush.msra.mxu0 0.0
    %1051 = vmatpush.msra.mxu0 0.0
    %1052 = vmatpush.msra.mxu0 0.0
    %1053 = vmatpush.msra.mxu0 0.0
    %1054 = vmatpush.msra.mxu0 0.0
    %1055 = vmatpush.msra.mxu0 0.0
    %1056 = vmatpush.msra.mxu0 0.0
    %1057 = vmatpush.msra.mxu0 0.0
    %1058 = vmatpush.msra.mxu0 0.0
    %1059 = vmatpush.msra.mxu0 0.0
    %1060 = vmatpush.msra.mxu0 %v1021
    %1061 = vmatpush.msra.mxu0 %v1020
    %1062 = vmatpush.msra.mxu0 %v1019
    %1063 = vmatpush.msra.mxu0 %v1018
    %1064 = vmatmul.f32.gmra.mxu0 %v1046
    %v1065 = vpop.f32.mrf.mxu0
    %v1066 = vadd.f32 0.0, %v1065
    %1067 = vdwg.mxu0
    %v1068 = vmul.f32 %v1043, %v1043
    %v1069 = vsub.f32 %v1066, %v1068
    %v1070 = vmax.f32 %v1069, 0.0
    %v1071 = vadd.f32 %v1070, 1e-05
    %v1072 = vrsqrt.pop %v1071
    %v1073 = vmul.f32 %v1072, %v1071
    %v1074 = vmul.f32 %v1073, %v1072
    %v1075 = vmul.f32 0.5, %v1074
    %v1076 = vsub.f32 1.5, %v1075
    %v1077 = vmul.f32 %v1072, %v1076
    %vm1078 = vweird.f32 %v1071
    %vm1079 = vweird.f32 %v1072
    %vm1080 = vmor %vm1078, %vm1079
    %v1081 = vsel %vm1080, %v1072, %v1077
    %v1082 = vld [vmem:[%s35] sm:$0xff]
    %v1083 = vld [vmem:[%s35 + $0x8] sm:$0xff]
    %v1085 = vsel %vm150, %v1081, 0
    %1087 = vmatpush.msra.mxu0 0.0
    %1088 = vmatpush.msra.mxu0 0.0
    %1089 = vmatpush.msra.mxu0 0.0
    %1090 = vmatpush.msra.mxu0 0.0
    %1091 = vmatpush.msra.mxu0 0.0
    %1092 = vmatpush.msra.mxu0 0.0
    %1093 = vmatpush.msra.mxu0 0.0
    %1094 = vmatpush.msra.mxu0 0.0
    %1095 = vmatpush.msra.mxu0 0.0
    %1096 = vmatpush.msra.mxu0 0.0
    %1097 = vmatpush.msra.mxu0 0.0
    %1098 = vmatpush.msra.mxu0 0.0
    %1099 = vmatpush.msra.mxu0 0.0
    %1100 = vmatpush.msra.mxu0 0.0
    %1101 = vmatpush.msra.mxu0 %v1083
    %1102 = vmatpush.msra.mxu0 %v1082
    %1103 = vmatmul.f32.gmra.mxu0 %v1085
    %v1104 = vpop.f32.mrf.mxu0
    %v1105 = vadd.f32 0.0, %v1104
    %1106 = vdwg.mxu0
    %v1107 = vld [vmem:[%s37] sm:$0x1]
    %v1108 = vmul.f32 %v1043, %v1081
    %v1110 = vsel %vm150, %v1108, 0
    %1112 = vmatpush.msra.mxu0 0.0
    %1113 = vmatpush.msra.mxu0 0.0
    %1114 = vmatpush.msra.mxu0 0.0
    %1115 = vmatpush.msra.mxu0 0.0
    %1116 = vmatpush.msra.mxu0 0.0
    %1117 = vmatpush.msra.mxu0 0.0
    %1118 = vmatpush.msra.mxu0 0.0
    %1119 = vmatpush.msra.mxu0 0.0
    %1120 = vmatpush.msra.mxu0 0.0
    %1121 = vmatpush.msra.mxu0 0.0
    %1122 = vmatpush.msra.mxu0 0.0
    %1123 = vmatpush.msra.mxu0 0.0
    %1124 = vmatpush.msra.mxu0 0.0
    %1125 = vmatpush.msra.mxu0 0.0
    %1126 = vmatpush.msra.mxu0 %v1083
    %1127 = vmatpush.msra.mxu0 %v1082
    %1128 = vmatmul.f32.gmra.mxu0 %v1110
    %v1129 = vpop.f32.mrf.mxu0
    %v1130 = vadd.f32 0.0, %v1129
    %1131 = vdwg.mxu0
    %v1132 = vsub.f32 %v1107, %v1130
    %v1133 = vperm.slane %v1105, 0
    %v1134 = vmul.f32 %v992, %v1133
    %v1136 = vperm.slane %v1132, 0
    %v1138 = vadd.f32 %v1134, %v1136
    %v1139 = vmax.f32 %v1138, 0.0
    %v1140 = vld [vmem:[%s39] sm:$0xff]
    %v1141 = vld [vmem:[%s39 + $0x8] sm:$0xff]
    %v1142 = vld [vmem:[%s39 + $0x10] sm:$0xff]
    %v1143 = vld [vmem:[%s39 + $0x18] sm:$0xff]
    %v1144 = vld [vmem:[%s43] sm:$0x1]
    %v1146 = vperm.slane %v1144, 0
    %v1149 = vsel %vm194, %v1139, 0
    %1151 = vmatpush.msra.mxu0 0.0
    %1152 = vmatpush.msra.mxu0 0.0
    %1153 = vmatpush.msra.mxu0 0.0
    %1154 = vmatpush.msra.mxu0 0.0
    %1155 = vmatpush.msra.mxu0 0.0
    %1156 = vmatpush.msra.mxu0 0.0
    %1157 = vmatpush.msra.mxu0 0.0
    %1158 = vmatpush.msra.mxu0 0.0
    %1159 = vmatpush.msra.mxu0 0.0
    %1160 = vmatpush.msra.mxu0 0.0
    %1161 = vmatpush.msra.mxu0 0.0
    %1162 = vmatpush.msra.mxu0 0.0
    %1163 = vmatpush.msra.mxu0 %v1143
    %1164 = vmatpush.msra.mxu0 %v1142
    %1165 = vmatpush.msra.mxu0 %v1141
    %1166 = vmatpush.msra.mxu0 %v1140
    %1167 = vmatmul.f32.gmra.mxu0 %v1149
    %v1168 = vpop.f32.mrf.mxu0
    %v1169 = vadd.f32 %v1146, %v1168
    %1170 = vdwg.mxu0
    %vm1171 = vcmask 386048
    %1172 = vst.msk [vmem:[#allocation2] sm:$0x3] %vm1171, %v1169
    %s1173 = scalar_lea.vmem [#allocation2], 2
    %vm1174 = vcmask 388098
    %1175 = vst.msk [vmem:[%s1173 - $0x2] sm:$0xc] %vm1174, %v1169
    %v1176 = vld [vmem:[%s41] sm:$0xff]
    %v1177 = vld [vmem:[%s41 + $0x8] sm:$0xff]
    %v1178 = vld [vmem:[%s45] sm:$0x1]
    %v1179 = vld [vmem:[#allocation2] sm:$0x3]
    %v1181 = vperm.slane %v1178, 0
    %v1184 = vsel %vm150, 0.0, 0
    %1186 = vmatpush.msra.mxu0 0.0
    %1187 = vmatpush.msra.mxu0 0.0
    %1188 = vmatpush.msra.mxu0 0.0
    %1189 = vmatpush.msra.mxu0 0.0
    %1190 = vmatpush.msra.mxu0 0.0
    %1191 = vmatpush.msra.mxu0 0.0
    %1192 = vmatpush.msra.mxu0 0.0
    %1193 = vmatpush.msra.mxu0 0.0
    %1194 = vmatpush.msra.mxu0 0.0
    %1195 = vmatpush.msra.mxu0 0.0
    %1196 = vmatpush.msra.mxu0 0.0
    %1197 = vmatpush.msra.mxu0 0.0
    %1198 = vmatpush.msra.mxu0 0.0
    %1199 = vmatpush.msra.mxu0 0.0
    %1200 = vmatpush.msra.mxu0 %v1177
    %1201 = vmatpush.msra.mxu0 %v1176
    %1202 = vmatmul.f32.gmra.mxu0 %v1184
    %v1203 = vpop.f32.mrf.mxu0
    %v1204 = vadd.f32 %v1181, %v1203
    %1205 = vdwg.mxu0
    %v1206 = vadd.f32 %v1179, %v1204
    %v1207 = vxor.u32 %v1206, 2147483648
    %v1208 = vmul.f32 %v1207, 1.442695
    %v1209 = vpow.pop %v1208
    %v1210 = vadd.f32 %v1209, 1.0
    %v1211 = vrcp.pop %v1210
    %v1212 = vmul.f32 %v1210, %v1211
    %v1213 = vsub.f32 1.0, %v1212
    %v1214 = vmul.f32 %v1211, %v1213
    %v1215 = vadd.f32 %v1211, %v1214
    %vm1216 = vweird.f32 %v1210
    %vm1217 = vweird.f32 %v1211
    %vm1218 = vmor %vm1216, %vm1217
    %v1219 = vsel %vm1218, %v1211, %v1215
    %v1220 = vand.u32 2147483647, %v1210
    %vm1221 = vcmp.eq.f32.partialorder %v1220, 8.507059e+37
    %v1222 = vand.u32 %v1210, 2147483648
    %v1223 = vor.u32 1.1754944e-38, %v1222
    %v1224 = vsel %vm1221, %v1223, %v1219
    %v1225 = vmul.f32 1.0, %v1224
    %1227 = vrot.lane.b32.xlu0 %v1204, 96
    %v1228 = vpop.permute.xlu0 %1227
    %v1230 = vmul.f32 %v1225, %v1228
    %1232 = vrot.lane.b32.xlu0 %v1230, 32
    %v1233 = vpop.permute.xlu0 %1232
    %v1235 = vadd.f32 %v1179, %v1233
    %v1236 = vtanh.pop %v1235
    %v1237 = vsub.f32 1.0, %v1225
    %1239 = vrot.lane.b32.xlu0 %v1236, 112
    %v1240 = vpop.permute.xlu0 %1239
    %v1242 = vmul.f32 %v1237, %v1240
    %v1243 = vmul.f32 %v1225, 0.0
    %v1244 = vadd.f32 %v1242, %v1243
    %v1245 = vld [vmem:[%s1173] sm:$0x3]
    %1247 = vrot.lane.b32.xlu0 %v1244, 112
    %v1248 = vpop.permute.xlu0 %1247
    %v1249 = vsel %vm150, %v1248, 0
    %1251 = vmatpush.msra.mxu0 0.0
    %1252 = vmatpush.msra.mxu0 0.0
    %1253 = vmatpush.msra.mxu0 0.0
    %1254 = vmatpush.msra.mxu0 0.0
    %1255 = vmatpush.msra.mxu0 0.0
    %1256 = vmatpush.msra.mxu0 0.0
    %1257 = vmatpush.msra.mxu0 0.0
    %1258 = vmatpush.msra.mxu0 0.0
    %1259 = vmatpush.msra.mxu0 0.0
    %1260 = vmatpush.msra.mxu0 0.0
    %1261 = vmatpush.msra.mxu0 0.0
    %1262 = vmatpush.msra.mxu0 0.0
    %1263 = vmatpush.msra.mxu0 0.0
    %1264 = vmatpush.msra.mxu0 0.0
    %1265 = vmatpush.msra.mxu0 %v1177
    %1266 = vmatpush.msra.mxu0 %v1176
    %1267 = vmatmul.f32.gmra.mxu0 %v1249
    %v1268 = vpop.f32.mrf.mxu0
    %v1269 = vadd.f32 %v1181, %v1268
    %1270 = vdwg.mxu0
    %v1271 = vadd.f32 %v1245, %v1269
    %v1272 = vxor.u32 %v1271, 2147483648
    %v1273 = vmul.f32 %v1272, 1.442695
    %v1274 = vpow.pop %v1273
    %v1275 = vadd.f32 %v1274, 1.0
    %v1276 = vrcp.pop %v1275
    %v1277 = vmul.f32 %v1275, %v1276
    %v1278 = vsub.f32 1.0, %v1277
    %v1279 = vmul.f32 %v1276, %v1278
    %v1280 = vadd.f32 %v1276, %v1279
    %vm1281 = vweird.f32 %v1275
    %vm1282 = vweird.f32 %v1276
    %vm1283 = vmor %vm1281, %vm1282
    %v1284 = vsel %vm1283, %v1276, %v1280
    %v1285 = vand.u32 2147483647, %v1275
    %vm1286 = vcmp.eq.f32.partialorder %v1285, 8.507059e+37
    %v1287 = vand.u32 %v1275, 2147483648
    %v1288 = vor.u32 1.1754944e-38, %v1287
    %v1289 = vsel %vm1286, %v1288, %v1284
    %v1290 = vmul.f32 1.0, %v1289
    %1292 = vrot.lane.b32.xlu0 %v1269, 96
    %v1293 = vpop.permute.xlu0 %1292
    %v1295 = vmul.f32 %v1290, %v1293
    %1297 = vrot.lane.b32.xlu0 %v1295, 32
    %v1298 = vpop.permute.xlu0 %1297
    %v1300 = vadd.f32 %v1245, %v1298
    %v1301 = vtanh.pop %v1300
    %v1302 = vsub.f32 1.0, %v1290
    %1304 = vrot.lane.b32.xlu0 %v1301, 112
    %v1305 = vpop.permute.xlu0 %1304
    %v1307 = vmul.f32 %v1302, %v1305
    %v1308 = vmul.f32 %v1290, %v1244
    %v1309 = vadd.f32 %v1307, %v1308
    %v1310 = vld [vmem:[%s47] sm:$0xff]
    %v1311 = vld [vmem:[%s47 + $0x8] sm:$0xff]
    %1313 = vrot.lane.b32.xlu0 %v1309, 112
    %v1314 = vpop.permute.xlu0 %1313
    %v1315 = vsel %vm150, %v1314, 0
    %1317 = vmatpush.msra.mxu0 0.0
    %1318 = vmatpush.msra.mxu0 0.0
    %1319 = vmatpush.msra.mxu0 0.0
    %1320 = vmatpush.msra.mxu0 0.0
    %1321 = vmatpush.msra.mxu0 0.0
    %1322 = vmatpush.msra.mxu0 0.0
    %1323 = vmatpush.msra.mxu0 0.0
    %1324 = vmatpush.msra.mxu0 0.0
    %1325 = vmatpush.msra.mxu0 0.0
    %1326 = vmatpush.msra.mxu0 0.0
    %1327 = vmatpush.msra.mxu0 0.0
    %1328 = vmatpush.msra.mxu0 0.0
    %1329 = vmatpush.msra.mxu0 0.0
    %1330 = vmatpush.msra.mxu0 0.0
    %1331 = vmatpush.msra.mxu0 %v1311
    %1332 = vmatpush.msra.mxu0 %v1310
    %1333 = vmatmul.f32.gmra.mxu0 %v1315
    %v1334 = vpop.f32.mrf.mxu0
    %v1335 = vadd.f32 0.0, %v1334
    %1336 = vdwg.mxu0
    %v1337 = vld [vmem:[%s49] sm:$0xff]
    %v1338 = vld [vmem:[%s49 + $0x8] sm:$0xff]
    %v1339 = vld [vmem:[%s49 + $0x10] sm:$0xff]
    %v1340 = vld [vmem:[%s49 + $0x18] sm:$0xff]
    %v1341 = vld [vmem:[%s51] sm:$0xff]
    %v1342 = vtanh.pop %v1341
    %v1344 = vsel %vm778, %v1337, 0
    %v1347 = vsel %vm778, %v1338, 0
    %v1350 = vsel %vm778, %v1339, 0
    %v1353 = vsel %vm778, %v1340, 0
    %1355 = vmatpush.msra.mxu0 0.0
    %1356 = vmatpush.msra.mxu0 0.0
    %1357 = vmatpush.msra.mxu0 0.0
    %1358 = vmatpush.msra.mxu0 0.0
    %1359 = vmatpush.msra.mxu0 0.0
    %1360 = vmatpush.msra.mxu0 0.0
    %1361 = vmatpush.msra.mxu0 0.0
    %1362 = vmatpush.msra.mxu0 0.0
    %1363 = vmatpush.msra.mxu0 0.0
    %1364 = vmatpush.msra.mxu0 0.0
    %1365 = vmatpush.msra.mxu0 0.0
    %1366 = vmatpush.msra.mxu0 0.0
    %1367 = vmatpush.msra.mxu0 0.0
    %1368 = vmatpush.msra.mxu0 0.0
    %1369 = vmatpush.msra.mxu0 0.0
    %1370 = vmatpush.msra.mxu0 %v1342
    %1371 = vmatmul.f32.gmra.mxu0 %v1344
    %v1372 = vpop.f32.mrf.mxu0
    %v1373 = vadd.f32 0.0, %v1372
    %1374 = vmatmul.f32.gmra.mxu0 %v1347
    %v1375 = vpop.f32.mrf.mxu0
    %v1376 = vadd.f32 0.0, %v1375
    %1377 = vmatmul.f32.gmra.mxu0 %v1350
    %v1378 = vpop.f32.mrf.mxu0
    %v1379 = vadd.f32 0.0, %v1378
    %1380 = vmatmul.f32.gmra.mxu0 %v1353
    %v1381 = vpop.f32.mrf.mxu0
    %v1382 = vadd.f32 0.0, %v1381
    %1383 = vdwg.mxu0
    %v1384 = vld [vmem:[%s59] sm:$0xff]
    %v1385 = vld [vmem:[%s59 + $0x8] sm:$0x3]
    %vm1386 = vcmask 80896
    %v1388 = vsel %vm1386, %v1373, 0
    %v1391 = vsel %vm1386, %v1376, 0
    %v1394 = vsel %vm1386, %v1379, 0
    %v1397 = vsel %vm1386, %v1382, 0
    %vm1399 = vcmask 1041408
    %v1401 = vsel %vm1399, %v1385, 0
    %1403 = vmatpush.msra.mxu0 0.0
    %1404 = vmatpush.msra.mxu0 0.0
    %1405 = vmatpush.msra.mxu0 0.0
    %1406 = vmatpush.msra.mxu0 0.0
    %1407 = vmatpush.msra.mxu0 0.0
    %1408 = vmatpush.msra.mxu0 0.0
    %1409 = vmatpush.msra.mxu0 0.0
    %1410 = vmatpush.msra.mxu0 0.0
    %1411 = vmatpush.msra.mxu0 0.0
    %1412 = vmatpush.msra.mxu0 0.0
    %1413 = vmatpush.msra.mxu0 0.0
    %1414 = vmatpush.msra.mxu0 0.0
    %1415 = vmatpush.msra.mxu0 0.0
    %1416 = vmatpush.msra.mxu0 0.0
    %1417 = vmatpush.msra.mxu0 %v1401
    %1418 = vmatpush.msra.mxu0 %v1384
    %1419 = vmatmul.f32.gmra.mxu0 %v1388
    %v1420 = vpop.f32.mrf.mxu0
    %v1421 = vadd.f32 0.0, %v1420
    %1422 = vmatmul.f32.gmra.mxu0 %v1391
    %v1423 = vpop.f32.mrf.mxu0
    %v1424 = vadd.f32 0.0, %v1423
    %1425 = vmatmul.f32.gmra.mxu0 %v1394
    %v1426 = vpop.f32.mrf.mxu0
    %v1427 = vadd.f32 0.0, %v1426
    %1428 = vmatmul.f32.gmra.mxu0 %v1397
    %v1429 = vpop.f32.mrf.mxu0
    %v1430 = vadd.f32 0.0, %v1429
    %1431 = vdwg.mxu0
    %v1432 = vld [vmem:[%s57] sm:$0xff]
    %v1433 = vld [vmem:[%s57 + $0x8] sm:$0xff]
    %v1434 = vld [vmem:[%s57 + $0x10] sm:$0xff]
    %v1435 = vld [vmem:[%s57 + $0x18] sm:$0xff]
    %v1436 = vmul.f32 %v1421, %v1432
    %v1437 = vmul.f32 %v1424, %v1433
    %v1438 = vmul.f32 %v1427, %v1434
    %v1439 = vmul.f32 %v1430, %v1435
    %v1441 = vsel %vm194, %v1335, 0
    %1443 = vmatpush.msra.mxu0 0.0
    %1444 = vmatpush.msra.mxu0 0.0
    %1445 = vmatpush.msra.mxu0 0.0
    %1446 = vmatpush.msra.mxu0 0.0
    %1447 = vmatpush.msra.mxu0 0.0
    %1448 = vmatpush.msra.mxu0 0.0
    %1449 = vmatpush.msra.mxu0 0.0
    %1450 = vmatpush.msra.mxu0 0.0
    %1451 = vmatpush.msra.mxu0 0.0
    %1452 = vmatpush.msra.mxu0 0.0
    %1453 = vmatpush.msra.mxu0 0.0
    %1454 = vmatpush.msra.mxu0 0.0
    %1455 = vmatpush.msra.mxu0 %v1439
    %1456 = vmatpush.msra.mxu0 %v1438
    %1457 = vmatpush.msra.mxu0 %v1437
    %1458 = vmatpush.msra.mxu0 %v1436
    %1459 = vmatmul.f32.gmra.mxu0 %v1441
    %v1460 = vpop.f32.mrf.mxu0
    %v1461 = vadd.f32 0.0, %v1460
    %1462 = vdwg.mxu0
    %v1463 = vmul.f32 %v1461, 0.35355338
    %vm1464 = vcmask 320512
    %v1465 = vsel %vm1464, %v1463, -inf
    %1466 = vmax.xlane.f32.xlu0 %v1465
    %v1467 = vpop.xlane.xlu0 %1466
    %v1468 = vsub.f32 %v1463, %v1467
    %v1469 = vmul.f32 %v1468, 1.442695
    %v1470 = vpow.pop %v1469
    %v1471 = vld [vmem:[%s63] sm:$0xff]
    %v1472 = vld [vmem:[%s63 + $0x8] sm:$0xff]
    %v1473 = vld [vmem:[%s63 + $0x10] sm:$0xff]
    %v1474 = vld [vmem:[%s63 + $0x18] sm:$0xff]
    %v1475 = vld [vmem:[%s63 + $0x20] sm:$0xff]
    %vm1476 = vcmask 326656
    %v1478 = vsel %vm1476, %v1470, 0
    %1480 = vmatpush.msra.mxu0 0.0
    %1481 = vmatpush.msra.mxu0 0.0
    %1482 = vmatpush.msra.mxu0 0.0
    %1483 = vmatpush.msra.mxu0 0.0
    %1484 = vmatpush.msra.mxu0 0.0
    %1485 = vmatpush.msra.mxu0 0.0
    %1486 = vmatpush.msra.mxu0 0.0
    %1487 = vmatpush.msra.mxu0 0.0
    %1488 = vmatpush.msra.mxu0 0.0
    %1489 = vmatpush.msra.mxu0 0.0
    %1490 = vmatpush.msra.mxu0 0.0
    %1491 = vmatpush.msra.mxu0 %v1475
    %1492 = vmatpush.msra.mxu0 %v1474
    %1493 = vmatpush.msra.mxu0 %v1473
    %1494 = vmatpush.msra.mxu0 %v1472
    %1495 = vmatpush.msra.mxu0 %v1471
    %1496 = vmatmul.f32.gmra.mxu0 %v1478
    %v1497 = vpop.f32.mrf.mxu0
    %v1498 = vadd.f32 0.0, %v1497
    %1499 = vdwg.mxu0
    %v1500 = vld [vmem:[%s65] sm:$0xf]
    %v1502 = vsel %vm455, %v1498, 0
    %v1505 = vsel %vm459, %v1500, 0
    %1507 = vmatpush.msra.mxu0 0.0
    %1508 = vmatpush.msra.mxu0 0.0
    %1509 = vmatpush.msra.mxu0 0.0
    %1510 = vmatpush.msra.mxu0 0.0
    %1511 = vmatpush.msra.mxu0 0.0
    %1512 = vmatpush.msra.mxu0 0.0
    %1513 = vmatpush.msra.mxu0 0.0
    %1514 = vmatpush.msra.mxu0 0.0
    %1515 = vmatpush.msra.mxu0 0.0
    %1516 = vmatpush.msra.mxu0 0.0
    %1517 = vmatpush.msra.mxu0 0.0
    %1518 = vmatpush.msra.mxu0 0.0
    %1519 = vmatpush.msra.mxu0 0.0
    %1520 = vmatpush.msra.mxu0 0.0
    %1521 = vmatpush.msra.mxu0 0.0
    %1522 = vmatpush.msra.mxu0 %v1505
    %1523 = vmatmul.f32.gmra.mxu0 %v1502
    %v1524 = vpop.f32.mrf.mxu0
    %v1525 = vadd.f32 0.0, %v1524
    %1526 = vdwg.mxu0
    %v1527 = vrcp.pop %v1525
    %v1528 = vmul.f32 %v1525, %v1527
    %v1529 = vsub.f32 1.0, %v1528
    %v1530 = vmul.f32 %v1527, %v1529
    %v1531 = vadd.f32 %v1527, %v1530
    %vm1532 = vweird.f32 %v1525
    %vm1533 = vweird.f32 %v1527
    %vm1534 = vmor %vm1532, %vm1533
    %v1535 = vsel %vm1534, %v1527, %v1531
    %v1536 = vand.u32 2147483647, %v1525
    %vm1537 = vcmp.eq.f32.partialorder %v1536, 8.507059e+37
    %v1538 = vand.u32 %v1525, 2147483648
    %v1539 = vor.u32 1.1754944e-38, %v1538
    %v1540 = vsel %vm1537, %v1539, %v1535
    %v1541 = vmul.f32 %v1470, %v1540
    %v1542 = vld [vmem:[%s53] sm:$0xff]
    %v1543 = vld [vmem:[%s53 + $0x8] sm:$0x3]
    %v1544 = vtanh.pop %v1542
    %v1545 = vtanh.pop %v1543
    %v1546 = vld [vmem:[%s55] sm:$0xff]
    %v1548 = vsel %vm778, %v1544, 0
    %v1551 = vsel %vm778, %v1545, 0
    %1553 = vmatpush.msra.mxu0 0.0
    %1554 = vmatpush.msra.mxu0 0.0
    %1555 = vmatpush.msra.mxu0 0.0
    %1556 = vmatpush.msra.mxu0 0.0
    %1557 = vmatpush.msra.mxu0 0.0
    %1558 = vmatpush.msra.mxu0 0.0
    %1559 = vmatpush.msra.mxu0 0.0
    %1560 = vmatpush.msra.mxu0 0.0
    %1561 = vmatpush.msra.mxu0 0.0
    %1562 = vmatpush.msra.mxu0 0.0
    %1563 = vmatpush.msra.mxu0 0.0
    %1564 = vmatpush.msra.mxu0 0.0
    %1565 = vmatpush.msra.mxu0 0.0
    %1566 = vmatpush.msra.mxu0 0.0
    %1567 = vmatpush.msra.mxu0 0.0
    %1568 = vmatpush.msra.mxu0 %v1546
    %1569 = vmatmul.f32.gmra.mxu0 %v1548
    %v1570 = vpop.f32.mrf.mxu0
    %v1571 = vadd.f32 0.0, %v1570
    %1572 = vmatmul.f32.gmra.mxu0 %v1551
    %v1573 = vpop.f32.mrf.mxu0
    %v1574 = vadd.f32 0.0, %v1573
    %1575 = vdwg.mxu0
    %v1576 = vld [vmem:[%s61] sm:$0xff]
    %v1577 = vld [vmem:[%s61 + $0x8] sm:$0xff]
    %v1578 = vld [vmem:[%s61 + $0x10] sm:$0xff]
    %v1579 = vld [vmem:[%s61 + $0x18] sm:$0xff]
    %v1580 = vld [vmem:[%s61 + $0x20] sm:$0xff]
    %v1582 = vsel %vm1386, %v1576, 0
    %v1585 = vsel %vm1386, %v1577, 0
    %v1588 = vsel %vm1386, %v1578, 0
    %v1591 = vsel %vm1386, %v1579, 0
    %v1594 = vsel %vm1386, %v1580, 0
    %v1597 = vsel %vm1399, %v1574, 0
    %1599 = vmatpush.msra.mxu0 0.0
    %1600 = vmatpush.msra.mxu0 0.0
    %1601 = vmatpush.msra.mxu0 0.0
    %1602 = vmatpush.msra.mxu0 0.0
    %1603 = vmatpush.msra.mxu0 0.0
    %1604 = vmatpush.msra.mxu0 0.0
    %1605 = vmatpush.msra.mxu0 0.0
    %1606 = vmatpush.msra.mxu0 0.0
    %1607 = vmatpush.msra.mxu0 0.0
    %1608 = vmatpush.msra.mxu0 0.0
    %1609 = vmatpush.msra.mxu0 0.0
    %1610 = vmatpush.msra.mxu0 0.0
    %1611 = vmatpush.msra.mxu0 0.0
    %1612 = vmatpush.msra.mxu0 0.0
    %1613 = vmatpush.msra.mxu0 %v1597
    %1614 = vmatpush.msra.mxu0 %v1571
    %1615 = vmatmul.f32.gmra.mxu0 %v1582
    %v1616 = vpop.f32.mrf.mxu0
    %v1617 = vadd.f32 0.0, %v1616
    %1618 = vmatmul.f32.gmra.mxu0 %v1585
    %v1619 = vpop.f32.mrf.mxu0
    %v1620 = vadd.f32 0.0, %v1619
    %1621 = vmatmul.f32.gmra.mxu0 %v1588
    %v1622 = vpop.f32.mrf.mxu0
    %v1623 = vadd.f32 0.0, %v1622
    %1624 = vmatmul.f32.gmra.mxu0 %v1591
    %v1625 = vpop.f32.mrf.mxu0
    %v1626 = vadd.f32 0.0, %v1625
    %1627 = vmatmul.f32.gmra.mxu0 %v1594
    %v1628 = vpop.f32.mrf.mxu0
    %v1629 = vadd.f32 0.0, %v1628
    %1630 = vdwg.mxu0
    %v1631 = vld [vmem:[%s67] sm:$0xff]
    %v1632 = vld [vmem:[%s67 + $0x8] sm:$0xff]
    %v1633 = vld [vmem:[%s67 + $0x10] sm:$0xff]
    %v1634 = vld [vmem:[%s67 + $0x18] sm:$0xff]
    %v1635 = vld [vmem:[%s67 + $0x20] sm:$0xff]
    %v1636 = vmul.f32 %v1617, %v1631
    %v1637 = vmul.f32 %v1620, %v1632
    %v1638 = vmul.f32 %v1623, %v1633
    %v1639 = vmul.f32 %v1626, %v1634
    %v1640 = vmul.f32 %v1629, %v1635
    %v1642 = vsel %vm1476, %v1541, 0
    %1644 = vmatpush.msra.mxu0 0.0
    %1645 = vmatpush.msra.mxu0 0.0
    %1646 = vmatpush.msra.mxu0 0.0
    %1647 = vmatpush.msra.mxu0 0.0
    %1648 = vmatpush.msra.mxu0 0.0
    %1649 = vmatpush.msra.mxu0 0.0
    %1650 = vmatpush.msra.mxu0 0.0
    %1651 = vmatpush.msra.mxu0 0.0
    %1652 = vmatpush.msra.mxu0 0.0
    %1653 = vmatpush.msra.mxu0 0.0
    %1654 = vmatpush.msra.mxu0 0.0
    %1655 = vmatpush.msra.mxu0 %v1640
    %1656 = vmatpush.msra.mxu0 %v1639
    %1657 = vmatpush.msra.mxu0 %v1638
    %1658 = vmatpush.msra.mxu0 %v1637
    %1659 = vmatpush.msra.mxu0 %v1636
    %1660 = vmatmul.f32.gmra.mxu0 %v1642
    %v1661 = vpop.f32.mrf.mxu0
    %v1662 = vadd.f32 0.0, %v1661
    %1663 = vdwg.mxu0
    %vm1664 = vcmask 254976
    %1665 = vst.msk [vmem:[#allocation3] sm:$0x3] %vm1664, %v1662
    // Predicated region
    $region138: #{gst_forward.1} parent=1 // pred_check
      _
    $region139: #{gst_forward.1} parent=1 // pred_check_branch
      %1667 = sbr.rel (0) target = $region141
    $region140: #{gst_forward.1} parent=1 // pred_region
      %1669 = vsyncadd [#allocation4], 0
      %s1671 = sshll.u32 [#allocation3], 4
      %s1672 = int_to_ptr.vmem [resolvable:$true] %s1671
      %s1673 = sshll.u32 %s69, 4
      %s1674 = int_to_ptr.hbm [resolvable:$true] %s1673
      %1676 = dma.vmem_to_hbm [thread:$0]  %s1672, 32, %s1674, [#allocation4]
    $region141: #{gst_forward.1} parent=1 // pred_fallthru
      _
    // Predicated region
    $region142: #{gst_forward.1} parent=1 // pred_check
      _
    $region143: #{gst_forward.1} parent=1 // pred_check_branch
      %1678 = sbr.rel (0) target = $region145
    $region144: #{gst_forward.1} parent=1 // pred_region
      %1680 = dma.done [#allocation4], 32
    $region145: #{gst_forward.1} parent=1 // pred_fallthru
      _
    %1681 = vsyncpa [#allocation4], 1

</llo_original>
